<compile_context>
chip_gen: v7x
topology: tpu7x:2x2x1
jax: 0.10.0
libtpu: 0.0.40
codegen_flags: <defaults>
</compile_context>

<pallas_src>
import functools

import jax
import jax.numpy as jnp
import numpy as np
from jax.experimental import pallas as pl
from jax.experimental.pallas import tpu as pltpu


# --------------------------------------------------------------------------
# Fused kernel: B_T batch elements per grid step, everything in VMEM.
# Activations are lane-dense (B_T, H, W*C); conv halo scratch is (B_T, H+2, W*C).
# --------------------------------------------------------------------------
def _gen_block_kernel(x_ref, n1_ref, n2_ref, wlat_ref,
                      bw1_ref, b1_ref, rn1_ref,
                      bw2_ref, b2_ref, rn2_ref,
                      sw_ref, sb_ref, g_ref, gt_ref,
                      o_ref, pad1_ref, pad2_ref,
                      *, H, W, cin, cout, bt, eps, slope):
    WC = W * cout
    M = bt * H
    inv_hw = 1.0 / float(H * W)

    # ---- AdaIN style/shift projections: one (bt, w_dim) @ (w_dim, 4*cout) matmul
    # (WSLinear scale already folded into sw by prepare_params).
    styles = jnp.dot(wlat_ref[...], sw_ref[...],
                     preferred_element_type=jnp.float32) + sb_ref[...]   # (bt, 4C)
    style1 = styles[:, 0 * cout:1 * cout]
    shift1 = styles[:, 1 * cout:2 * cout]
    style2 = styles[:, 2 * cout:3 * cout]
    shift2 = styles[:, 3 * cout:4 * cout]

    g = g_ref[...]      # (W*cout, cout)  channel-group reducer
    gt = gt_ref[...]    # (cout, W*cout)  channel broadcaster

    def conv3x3(pad_ref, bw_ref, b_ref, k_ch):
        # pad_ref: (bt, H+2, W*k_ch) f32, rows 0 and H+1 are zero halo
        # bw_ref : (3, W*k_ch, W*cout) bf16, dx taps + WS scale folded in
        acc = jnp.zeros((M, WC), jnp.float32)
        for dy in range(3):
            lhs = pad_ref[:, pl.ds(dy, H), :].reshape(M, W * k_ch)
            acc = acc + jnp.dot(lhs.astype(jnp.bfloat16), bw_ref[dy],
                                preferred_element_type=jnp.float32)
        return acc + b_ref[...]                                   # (M, WC)

    def noise_act_in_adain(y2d, noise_blk, rn_ref, style_c, shift_c):
        # noise add (replication matmul, scaler folded) + LeakyReLU(slope)
        nb = jnp.dot(noise_blk.reshape(M, W), rn_ref[...],
                     preferred_element_type=jnp.float32)          # (M, WC)
        t = y2d + nb
        t = jnp.where(t >= 0.0, t, slope * t)
        t3 = t.reshape(bt, H, WC)
        # per-(sample, channel) stats over HxW in one pass; two stat matmuls total
        s1 = jnp.sum(t3, axis=1)                                  # (bt, WC)
        s2 = jnp.sum(t3 * t3, axis=1)                             # (bt, WC)
        red = jnp.dot(jnp.concatenate([s1, s2], axis=0), g,
                      preferred_element_type=jnp.float32) * inv_hw  # (2*bt, C)
        mean_c = red[:bt]
        var_c = jnp.maximum(red[bt:] - mean_c * mean_c, 0.0)       # biased, clamped
        # fold InstanceNorm + AdaIN into one per-channel affine: out = t*a + b
        a_c = jax.lax.rsqrt(var_c + eps) * style_c                 # (bt, C)
        b_c = shift_c - mean_c * a_c
        ab = jnp.dot(jnp.concatenate([a_c, b_c], axis=0), gt,
                     preferred_element_type=jnp.float32)           # (2*bt, WC)
        a_b = ab[:bt].reshape(bt, 1, WC)
        b_b = ab[bt:].reshape(bt, 1, WC)
        return t3 * a_b + b_b                                      # (bt, H, WC)

    # ---- stage 1: halo-pad in VMEM (zero only the border rows), conv1, fused tail
    zr1 = jnp.zeros((bt, 1, W * cin), jnp.float32)
    pad1_ref[:, pl.ds(0, 1), :] = zr1
    pad1_ref[:, pl.ds(H + 1, 1), :] = zr1
    pad1_ref[:, pl.ds(1, H), :] = x_ref[...]
    y = conv3x3(pad1_ref, bw1_ref, b1_ref, cin)
    y3 = noise_act_in_adain(y, n1_ref[...], rn1_ref, style1, shift1)

    # ---- stage 2
    zr2 = jnp.zeros((bt, 1, WC), jnp.float32)
    pad2_ref[:, pl.ds(0, 1), :] = zr2
    pad2_ref[:, pl.ds(H + 1, 1), :] = zr2
    pad2_ref[:, pl.ds(1, H), :] = y3
    y = conv3x3(pad2_ref, bw2_ref, b2_ref, cout)
    y3 = noise_act_in_adain(y, n2_ref[...], rn2_ref, style2, shift2)

    o_ref[...] = y3


# --------------------------------------------------------------------------
# One-time parameter preparation (hoisted out of the per-forward path).
# --------------------------------------------------------------------------
def prepare_params(params, H, W, in_ch, out_ch, w_dim):
    del H  # layout only depends on W
    conv_scale1 = (2.0 / (in_ch * 9)) ** 0.5
    conv_scale2 = (2.0 / (out_ch * 9)) ** 0.5
    lin_scale = (2.0 / w_dim) ** 0.5

    def fold_conv(w_oihw, scale):
        co_, ci_ = w_oihw.shape[0], w_oihw.shape[1]
        # OIHW -> (dy, dx, ci, co), WS scale folded into the weights
        w_t = jnp.transpose(w_oihw, (2, 3, 1, 0)) * scale
        # banded selector: sel[dx, q, x] = 1 iff q == x + dx - 1 (same-padding,
        # out-of-range taps simply absent -> border handled by the band itself)
        q = jnp.arange(W)[None, :, None]
        xo = jnp.arange(W)[None, None, :]
        dx = jnp.arange(3)[:, None, None]
        sel = (q == xo + dx - 1).astype(jnp.float32)               # (3, W, W)
        bw = jnp.einsum('dqx,edio->eqixo', sel, w_t)               # (dy,q,ci,x,co)
        return bw.reshape(3, W * ci_, W * co_).astype(jnp.bfloat16)

    eye_w = jnp.eye(W, dtype=jnp.float32)

    def noise_mat(ns):
        # rn[x, x'*C + c] = (x == x') * noise_scaler[c]
        return (eye_w[:, :, None] * ns[None, None, :]).reshape(W, W * out_ch)

    g = jnp.tile(jnp.eye(out_ch, dtype=jnp.float32), (W, 1))       # (W*C, C)

    sw = (lin_scale * jnp.concatenate(
        [params["adain1_style_w"], params["adain1_shift_w"],
         params["adain2_style_w"], params["adain2_shift_w"]], axis=0)).T  # (w_dim, 4C)
    sb = jnp.concatenate(
        [params["adain1_style_b"], params["adain1_shift_b"],
         params["adain2_style_b"], params["adain2_shift_b"]], axis=0
    ).reshape(1, 4 * out_ch)

    return {
        "bw1": fold_conv(params["conv1_w"], conv_scale1),
        "bw2": fold_conv(params["conv2_w"], conv_scale2),
        "b1": jnp.tile(params["conv1_b"], W).reshape(1, W * out_ch),
        "b2": jnp.tile(params["conv2_b"], W).reshape(1, W * out_ch),
        "rn1": noise_mat(params["noise1_scaler"]),
        "rn2": noise_mat(params["noise2_scaler"]),
        "sw": sw, "sb": sb, "g": g, "gt": g.T,
    }


def _pick_block_batch(n, cap=16):
    if n <= cap:
        return n
    for bt in (16, 8, 4, 2):
        if bt <= cap and n % bt == 0:
            return bt
    return 1


# --------------------------------------------------------------------------
# Forward wrapper: NCHW in / NCHW out; takes pre-prepared (folded) params.
# --------------------------------------------------------------------------
def gen_block_forward(x_nchw, w_latent, prep, noise1, noise2,
                      in_ch, out_ch, w_dim):
    N, _, H, W = x_nchw.shape
    WC = W * out_ch
    bt = _pick_block_batch(N)

    # lane-dense input: (N, H, W*Cin)
    x_ld = jnp.transpose(x_nchw, (0, 2, 3, 1)).reshape(N, H, W * in_ch)

    kernel = functools.partial(_gen_block_kernel, H=H, W=W, cin=in_ch,
                               cout=out_ch, bt=bt, eps=1e-5, slope=0.2)

    out_ld = pl.pallas_call(
        kernel,
        out_shape=jax.ShapeDtypeStruct((N, H, WC), jnp.float32),
        grid=(N // bt,),
        in_specs=[
            pl.BlockSpec((bt, H, W * in_ch), lambda n: (n, 0, 0)),   # x (lane-dense)
            pl.BlockSpec((bt, H, W), lambda n: (n, 0, 0)),           # noise1 (compact)
            pl.BlockSpec((bt, H, W), lambda n: (n, 0, 0)),           # noise2 (compact)
            pl.BlockSpec((bt, w_dim), lambda n: (n, 0)),             # w latent
            pl.BlockSpec((3, W * in_ch, WC), lambda n: (0, 0, 0)),   # bw1 (bf16, banded)
            pl.BlockSpec((1, WC), lambda n: (0, 0)),                 # conv1 bias (tiled)
            pl.BlockSpec((W, WC), lambda n: (0, 0)),                 # noise1 repl. matrix
            pl.BlockSpec((3, WC, WC), lambda n: (0, 0, 0)),          # bw2 (bf16, banded)
            pl.BlockSpec((1, WC), lambda n: (0, 0)),                 # conv2 bias (tiled)
            pl.BlockSpec((W, WC), lambda n: (0, 0)),                 # noise2 repl. matrix
            pl.BlockSpec((w_dim, 4 * out_ch), lambda n: (0, 0)),     # style weights
            pl.BlockSpec((1, 4 * out_ch), lambda n: (0, 0)),         # style biases
            pl.BlockSpec((WC, out_ch), lambda n: (0, 0)),            # G
            pl.BlockSpec((out_ch, WC), lambda n: (0, 0)),            # G^T
        ],
        out_specs=pl.BlockSpec((bt, H, WC), lambda n: (n, 0, 0)),
        scratch_shapes=[
            pltpu.VMEM((bt, H + 2, W * in_ch), jnp.float32),  # conv1 halo buffer
            pltpu.VMEM((bt, H + 2, WC), jnp.float32),         # conv2 halo buffer
        ],
        compiler_params=pltpu.CompilerParams(
            dimension_semantics=("parallel",),
            vmem_limit_bytes=32 * 1024 * 1024),
    )(x_ld, noise1, noise2, w_latent,
      prep["bw1"], prep["b1"], prep["rn1"],
      prep["bw2"], prep["b2"], prep["rn2"],
      prep["sw"], prep["sb"], prep["g"], prep["gt"])

    # undo the lane-dense view: (N, H, W*C) -> (N, C, H, W)
    return jnp.transpose(out_ld.reshape(N, H, W, out_ch), (0, 3, 1, 2))


# --------------------------------------------------------------------------
# Parameter init (matches the PyTorch __init__: normal weights, zero biases,
# zero noise scalers).
# --------------------------------------------------------------------------
def init_params(key, in_ch, out_ch, w_dim):
    ks = jax.random.split(key, 6)
    return {
        "conv1_w": jax.random.normal(ks[0], (out_ch, in_ch, 3, 3), jnp.float32),
        "conv1_b": jnp.zeros((out_ch,), jnp.float32),
        "conv2_w": jax.random.normal(ks[1], (out_ch, out_ch, 3, 3), jnp.float32),
        "conv2_b": jnp.zeros((out_ch,), jnp.float32),
        "noise1_scaler": jnp.zeros((out_ch,), jnp.float32),
        "noise2_scaler": jnp.zeros((out_ch,), jnp.float32),
        "adain1_style_w": jax.random.normal(ks[2], (out_ch, w_dim), jnp.float32),
        "adain1_style_b": jnp.zeros((out_ch,), jnp.float32),
        "adain1_shift_w": jax.random.normal(ks[3], (out_ch, w_dim), jnp.float32),
        "adain1_shift_b": jnp.zeros((out_ch,), jnp.float32),
        "adain2_style_w": jax.random.normal(ks[4], (out_ch, w_dim), jnp.float32),
        "adain2_style_b": jnp.zeros((out_ch,), jnp.float32),
        "adain2_shift_w": jax.random.normal(ks[5], (out_ch, w_dim), jnp.float32),
        "adain2_shift_b": jnp.zeros((out_ch,), jnp.float32),
    }


# --------------------------------------------------------------------------
# Pure-JAX reference (NCHW, mirrors the PyTorch module) for validation
# --------------------------------------------------------------------------
def ref_forward(x, w, params, noise1_nchw, noise2_nchw, in_ch, out_ch, w_dim):
    prec = jax.lax.Precision.HIGHEST

    def ws_conv(x, weight, bias, scale):
        y = jax.lax.conv_general_dilated(
            x * scale, weight, window_strides=(1, 1),
            padding=((1, 1), (1, 1)),
            dimension_numbers=("NCHW", "OIHW", "NCHW"),
            precision=prec)
        return y + bias.reshape(1, -1, 1, 1)

    def ws_lin(wv, weight, bias, scale):
        return jnp.dot(wv * scale, weight.T, precision=prec) + bias

    def inorm(x, eps=1e-5):
        m = x.mean(axis=(2, 3), keepdims=True)
        v = ((x - m) ** 2).mean(axis=(2, 3), keepdims=True)
        return (x - m) / jnp.sqrt(v + eps)

    def lrelu(x):
        return jnp.where(x >= 0.0, x, 0.2 * x)

    lin_scale = (2.0 / w_dim) ** 0.5

    y = ws_conv(x, params["conv1_w"], params["conv1_b"], (2.0 / (in_ch * 9)) ** 0.5)
    y = y + noise1_nchw * params["noise1_scaler"].reshape(1, -1, 1, 1)
    y = inorm(lrelu(y))
    s = ws_lin(w, params["adain1_style_w"], params["adain1_style_b"], lin_scale)
    b = ws_lin(w, params["adain1_shift_w"], params["adain1_shift_b"], lin_scale)
    y = y * s[:, :, None, None] + b[:, :, None, None]

    y = ws_conv(y, params["conv2_w"], params["conv2_b"], (2.0 / (out_ch * 9)) ** 0.5)
    y = y + noise2_nchw * params["noise2_scaler"].reshape(1, -1, 1, 1)
    y = inorm(lrelu(y))
    s = ws_lin(w, params["adain2_style_w"], params["adain2_style_b"], lin_scale)
    b = ws_lin(w, params["adain2_shift_w"], params["adain2_shift_b"], lin_scale)
    return y * s[:, :, None, None] + b[:, :, None, None]


if __name__ == "__main__":
    N, in_ch, out_ch, H, W, w_dim = 2, 4, 8, 16, 16, 32

    key = jax.random.PRNGKey(0)
    kx, kw, kp, kn1, kn2, ks1, ks2 = jax.random.split(key, 7)
    x = jax.random.normal(kx, (N, in_ch, H, W), jnp.float32)        # NCHW like PyTorch
    w_latent = jax.random.normal(kw, (N, w_dim), jnp.float32)
    params = init_params(kp, in_ch, out_ch, w_dim)
    # Nonzero noise scalers so the noise path is actually exercised by the test.
    params["noise1_scaler"] = 0.3 * jax.random.normal(ks1, (out_ch,), jnp.float32)
    params["noise2_scaler"] = 0.3 * jax.random.normal(ks2, (out_ch,), jnp.float32)

    # Deterministic per-pixel "random" noise shared by kernel path and reference.
    noise1 = jax.random.normal(kn1, (N, H, W), jnp.float32)
    noise2 = jax.random.normal(kn2, (N, H, W), jnp.float32)

    # One-time weight folding / re-layout (hoisted out of the forward path).
    prep = prepare_params(params, H, W, in_ch, out_ch, w_dim)

    out = gen_block_forward(x, w_latent, prep, noise1, noise2,
                            in_ch, out_ch, w_dim)
    out = jax.block_until_ready(out)
    assert out.shape == (N, out_ch, H, W)

    ref = ref_forward(x, w_latent, params,
                      noise1[:, None, :, :], noise2[:, None, :, :],
                      in_ch, out_ch, w_dim)
    # Tolerance relaxed vs. the pure-f32 version: conv matmul operands are bf16
    # (f32 accumulation); everything else stays f32.
    np.testing.assert_allclose(np.asarray(out), np.asarray(ref),
                               rtol=5e-2, atol=5e-2)
    print("KERNEL_OK")
</pallas_src>

<mosaic_0001>
module attributes {stable_mosaic.version = 11 : i64} {
  func.func @_gen_block_kernel(%arg0: i32, %arg1: memref<2x16x64xf32, #tpu.memory_space<vmem>>, %arg2: memref<2x16x16xf32, #tpu.memory_space<vmem>>, %arg3: memref<2x16x16xf32, #tpu.memory_space<vmem>>, %arg4: memref<2x32xf32, #tpu.memory_space<vmem>>, %arg5: memref<3x64x128xbf16, #tpu.memory_space<vmem>>, %arg6: memref<1x128xf32, #tpu.memory_space<vmem>>, %arg7: memref<16x128xf32, #tpu.memory_space<vmem>>, %arg8: memref<3x128x128xbf16, #tpu.memory_space<vmem>>, %arg9: memref<1x128xf32, #tpu.memory_space<vmem>>, %arg10: memref<16x128xf32, #tpu.memory_space<vmem>>, %arg11: memref<32x32xf32, #tpu.memory_space<vmem>>, %arg12: memref<1x32xf32, #tpu.memory_space<vmem>>, %arg13: memref<128x8xf32, #tpu.memory_space<vmem>>, %arg14: memref<8x128xf32, #tpu.memory_space<vmem>>, %arg15: memref<2x16x128xf32, #tpu.memory_space<vmem>>, %arg16: memref<2x18x64xf32, #tpu.memory_space<vmem>>, %arg17: memref<2x18x128xf32, #tpu.memory_space<vmem>>) attributes {dimension_semantics = [#tpu.dimension_semantics<parallel>], iteration_bounds = array<i64: 1>, scalar_prefetch = 0 : i64, scratch_operands = 2 : i64, tpu.core_type = #tpu.core_type<tc>, window_params = [{transform_indices = @transform_0, window_bounds = array<i64: 2, 16, 64>}, {transform_indices = @transform_1, window_bounds = array<i64: 2, 16, 16>}, {transform_indices = @transform_2, window_bounds = array<i64: 2, 16, 16>}, {transform_indices = @transform_3, window_bounds = array<i64: 2, 32>}, {pipeline_mode = #tpu.pipeline_mode<synchronous>, transform_indices = @transform_4, window_bounds = array<i64: 3, 64, 128>}, {pipeline_mode = #tpu.pipeline_mode<synchronous>, transform_indices = @transform_5, window_bounds = array<i64: 1, 128>}, {pipeline_mode = #tpu.pipeline_mode<synchronous>, transform_indices = @transform_6, window_bounds = array<i64: 16, 128>}, {pipeline_mode = #tpu.pipeline_mode<synchronous>, transform_indices = @transform_7, window_bounds = array<i64: 3, 128, 128>}, {pipeline_mode = #tpu.pipeline_mode<synchronous>, transform_indices = @transform_8, window_bounds = array<i64: 1, 128>}, {pipeline_mode = #tpu.pipeline_mode<synchronous>, transform_indices = @transform_9, window_bounds = array<i64: 16, 128>}, {pipeline_mode = #tpu.pipeline_mode<synchronous>, transform_indices = @transform_10, window_bounds = array<i64: 32, 32>}, {pipeline_mode = #tpu.pipeline_mode<synchronous>, transform_indices = @transform_11, window_bounds = array<i64: 1, 32>}, {pipeline_mode = #tpu.pipeline_mode<synchronous>, transform_indices = @transform_12, window_bounds = array<i64: 128, 8>}, {pipeline_mode = #tpu.pipeline_mode<synchronous>, transform_indices = @transform_13, window_bounds = array<i64: 8, 128>}, {transform_indices = @transform_14, window_bounds = array<i64: 2, 16, 128>}]} {
    %c0 = arith.constant 0 : index
    %c0_0 = arith.constant 0 : index
    %0 = vector.load %arg4[%c0, %c0_0] : memref<2x32xf32, #tpu.memory_space<vmem>>, vector<2x32xf32>
    %c0_1 = arith.constant 0 : index
    %c0_2 = arith.constant 0 : index
    %1 = vector.load %arg11[%c0_1, %c0_2] : memref<32x32xf32, #tpu.memory_space<vmem>>, vector<32x32xf32>
    %cst = arith.constant dense<0.000000e+00> : vector<2x32xf32>
    %2 = tpu.matmul %0, %1, %cst {dimension_numbers = #tpu.dot_dimension_numbers<[1], [0], [0], [1], [0, 0, 1, 1], [], []>} : vector<2x32xf32>, vector<32x32xf32>, vector<2x32xf32> -> vector<2x32xf32>
    %c0_3 = arith.constant 0 : index
    %c0_4 = arith.constant 0 : index
    %3 = vector.load %arg12[%c0_3, %c0_4] : memref<1x32xf32, #tpu.memory_space<vmem>>, vector<1x32xf32>
    %4 = vector.broadcast %3 : vector<1x32xf32> to vector<2x32xf32>
    %5 = arith.addf %2, %4 : vector<2x32xf32>
    %6 = vector.extract_strided_slice %5 {offsets = [0, 0], sizes = [2, 8], strides = [1, 1]} : vector<2x32xf32> to vector<2x8xf32>
    %7 = vector.extract_strided_slice %5 {offsets = [0, 8], sizes = [2, 8], strides = [1, 1]} : vector<2x32xf32> to vector<2x8xf32>
    %8 = vector.extract_strided_slice %5 {offsets = [0, 16], sizes = [2, 8], strides = [1, 1]} : vector<2x32xf32> to vector<2x8xf32>
    %9 = vector.extract_strided_slice %5 {offsets = [0, 24], sizes = [2, 8], strides = [1, 1]} : vector<2x32xf32> to vector<2x8xf32>
    %c0_5 = arith.constant 0 : index
    %c0_6 = arith.constant 0 : index
    %10 = vector.load %arg13[%c0_5, %c0_6] : memref<128x8xf32, #tpu.memory_space<vmem>>, vector<128x8xf32>
    %c0_7 = arith.constant 0 : index
    %c0_8 = arith.constant 0 : index
    %11 = vector.load %arg14[%c0_7, %c0_8] : memref<8x128xf32, #tpu.memory_space<vmem>>, vector<8x128xf32>
    %cst_9 = arith.constant 0.000000e+00 : f32
    %12 = vector.broadcast %cst_9 : f32 to vector<2x1x64xf32>
    %c0_10 = arith.constant 0 : index
    %c0_11 = arith.constant 0 : index
    %c0_12 = arith.constant 0 : index
    %13 = vector.load %arg16[%c0_10, %c0_11, %c0_12] : memref<2x18x64xf32, #tpu.memory_space<vmem>>, vector<2x1x64xf32>
    tpu.vector_store %arg16[%c0_10, %c0_11, %c0_12], %12 {strides = array<i32>} : memref<2x18x64xf32, #tpu.memory_space<vmem>>, vector<2x1x64xf32>,
    %c0_13 = arith.constant 0 : index
    %c17 = arith.constant 17 : index
    %c0_14 = arith.constant 0 : index
    %14 = vector.load %arg16[%c0_13, %c17, %c0_14] : memref<2x18x64xf32, #tpu.memory_space<vmem>>, vector<2x1x64xf32>
    tpu.vector_store %arg16[%c0_13, %c17, %c0_14], %12 {strides = array<i32>} : memref<2x18x64xf32, #tpu.memory_space<vmem>>, vector<2x1x64xf32>,
    %c0_15 = arith.constant 0 : index
    %c0_16 = arith.constant 0 : index
    %c0_17 = arith.constant 0 : index
    %15 = vector.load %arg1[%c0_15, %c0_16, %c0_17] : memref<2x16x64xf32, #tpu.memory_space<vmem>>, vector<2x16x64xf32>
    %c0_18 = arith.constant 0 : index
    %c1 = arith.constant 1 : index
    %c0_19 = arith.constant 0 : index
    %16 = vector.load %arg16[%c0_18, %c1, %c0_19] : memref<2x18x64xf32, #tpu.memory_space<vmem>>, vector<2x16x64xf32>
    tpu.vector_store %arg16[%c0_18, %c1, %c0_19], %15 {strides = array<i32>} : memref<2x18x64xf32, #tpu.memory_space<vmem>>, vector<2x16x64xf32>,
    %cst_20 = arith.constant 0.000000e+00 : f32
    %17 = vector.broadcast %cst_20 : f32 to vector<32x128xf32>
    %c0_21 = arith.constant 0 : index
    %c0_22 = arith.constant 0 : index
    %c0_23 = arith.constant 0 : index
    %18 = vector.load %arg16[%c0_21, %c0_22, %c0_23] : memref<2x18x64xf32, #tpu.memory_space<vmem>>, vector<2x16x64xf32>
    %19 = vector.shape_cast %18 : vector<2x16x64xf32> to vector<32x64xf32>
    %20 = arith.truncf %19 : vector<32x64xf32> to vector<32x64xbf16>
    %c0_24 = arith.constant 0 : index
    %c0_25 = arith.constant 0 : index
    %c0_26 = arith.constant 0 : index
    %21 = vector.load %arg5[%c0_24, %c0_25, %c0_26] : memref<3x64x128xbf16, #tpu.memory_space<vmem>>, vector<1x64x128xbf16>
    %22 = vector.shape_cast %21 : vector<1x64x128xbf16> to vector<64x128xbf16>
    %cst_27 = arith.constant dense<0.000000e+00> : vector<32x128xf32>
    %23 = tpu.matmul %20, %22, %cst_27 {dimension_numbers = #tpu.dot_dimension_numbers<[1], [0], [0], [1], [0, 0, 1, 1], [], []>} : vector<32x64xbf16>, vector<64x128xbf16>, vector<32x128xf32> -> vector<32x128xf32>
    %24 = arith.addf %17, %23 : vector<32x128xf32>
    %c0_28 = arith.constant 0 : index
    %c1_29 = arith.constant 1 : index
    %c0_30 = arith.constant 0 : index
    %25 = vector.load %arg16[%c0_28, %c1_29, %c0_30] : memref<2x18x64xf32, #tpu.memory_space<vmem>>, vector<2x16x64xf32>
    %26 = vector.shape_cast %25 : vector<2x16x64xf32> to vector<32x64xf32>
    %27 = arith.truncf %26 : vector<32x64xf32> to vector<32x64xbf16>
    %c1_31 = arith.constant 1 : index
    %c0_32 = arith.constant 0 : index
    %c0_33 = arith.constant 0 : index
    %28 = vector.load %arg5[%c1_31, %c0_32, %c0_33] : memref<3x64x128xbf16, #tpu.memory_space<vmem>>, vector<1x64x128xbf16>
    %29 = vector.shape_cast %28 : vector<1x64x128xbf16> to vector<64x128xbf16>
    %cst_34 = arith.constant dense<0.000000e+00> : vector<32x128xf32>
    %30 = tpu.matmul %27, %29, %cst_34 {dimension_numbers = #tpu.dot_dimension_numbers<[1], [0], [0], [1], [0, 0, 1, 1], [], []>} : vector<32x64xbf16>, vector<64x128xbf16>, vector<32x128xf32> -> vector<32x128xf32>
    %31 = arith.addf %24, %30 : vector<32x128xf32>
    %c0_35 = arith.constant 0 : index
    %c2 = arith.constant 2 : index
    %c0_36 = arith.constant 0 : index
    %32 = vector.load %arg16[%c0_35, %c2, %c0_36] : memref<2x18x64xf32, #tpu.memory_space<vmem>>, vector<2x16x64xf32>
    %33 = vector.shape_cast %32 : vector<2x16x64xf32> to vector<32x64xf32>
    %34 = arith.truncf %33 : vector<32x64xf32> to vector<32x64xbf16>
    %c2_37 = arith.constant 2 : index
    %c0_38 = arith.constant 0 : index
    %c0_39 = arith.constant 0 : index
    %35 = vector.load %arg5[%c2_37, %c0_38, %c0_39] : memref<3x64x128xbf16, #tpu.memory_space<vmem>>, vector<1x64x128xbf16>
    %36 = vector.shape_cast %35 : vector<1x64x128xbf16> to vector<64x128xbf16>
    %cst_40 = arith.constant dense<0.000000e+00> : vector<32x128xf32>
    %37 = tpu.matmul %34, %36, %cst_40 {dimension_numbers = #tpu.dot_dimension_numbers<[1], [0], [0], [1], [0, 0, 1, 1], [], []>} : vector<32x64xbf16>, vector<64x128xbf16>, vector<32x128xf32> -> vector<32x128xf32>
    %38 = arith.addf %31, %37 : vector<32x128xf32>
    %c0_41 = arith.constant 0 : index
    %c0_42 = arith.constant 0 : index
    %39 = vector.load %arg6[%c0_41, %c0_42] : memref<1x128xf32, #tpu.memory_space<vmem>>, vector<1x128xf32>
    %40 = vector.broadcast %39 : vector<1x128xf32> to vector<32x128xf32>
    %41 = arith.addf %38, %40 : vector<32x128xf32>
    %c0_43 = arith.constant 0 : index
    %c0_44 = arith.constant 0 : index
    %c0_45 = arith.constant 0 : index
    %42 = vector.load %arg2[%c0_43, %c0_44, %c0_45] : memref<2x16x16xf32, #tpu.memory_space<vmem>>, vector<2x16x16xf32>
    %43 = vector.shape_cast %42 : vector<2x16x16xf32> to vector<32x16xf32>
    %c0_46 = arith.constant 0 : index
    %c0_47 = arith.constant 0 : index
    %44 = vector.load %arg7[%c0_46, %c0_47] : memref<16x128xf32, #tpu.memory_space<vmem>>, vector<16x128xf32>
    %cst_48 = arith.constant dense<0.000000e+00> : vector<32x128xf32>
    %45 = tpu.matmul %43, %44, %cst_48 {dimension_numbers = #tpu.dot_dimension_numbers<[1], [0], [0], [1], [0, 0, 1, 1], [], []>} : vector<32x16xf32>, vector<16x128xf32>, vector<32x128xf32> -> vector<32x128xf32>
    %46 = arith.addf %41, %45 : vector<32x128xf32>
    %cst_49 = arith.constant 0.000000e+00 : f32
    %47 = vector.broadcast %cst_49 : f32 to vector<32x128xf32>
    %48 = arith.cmpf oge, %46, %47 : vector<32x128xf32>
    %cst_50 = arith.constant 2.000000e-01 : f32
    %49 = vector.broadcast %cst_50 : f32 to vector<32x128xf32>
    %50 = arith.mulf %49, %46 : vector<32x128xf32>
    %51 = arith.select %48, %46, %50 : vector<32x128xi1>, vector<32x128xf32>
    %52 = vector.shape_cast %51 : vector<32x128xf32> to vector<2x16x128xf32>
    %cst_51 = arith.constant dense<0.000000e+00> : vector<2x128xf32>
    %53 = vector.multi_reduction <add>, %52, %cst_51 [1] : vector<2x16x128xf32> to vector<2x128xf32>
    %54 = arith.mulf %52, %52 : vector<2x16x128xf32>
    %cst_52 = arith.constant dense<0.000000e+00> : vector<2x128xf32>
    %55 = vector.multi_reduction <add>, %54, %cst_52 [1] : vector<2x16x128xf32> to vector<2x128xf32>
    %56 = tpu.concatenate %53, %55 in 0 : vector<2x128xf32>, vector<2x128xf32> -> vector<4x128xf32>
    %cst_53 = arith.constant dense<0.000000e+00> : vector<4x8xf32>
    %57 = tpu.matmul %56, %10, %cst_53 {dimension_numbers = #tpu.dot_dimension_numbers<[1], [0], [0], [1], [0, 0, 1, 1], [], []>} : vector<4x128xf32>, vector<128x8xf32>, vector<4x8xf32> -> vector<4x8xf32>
    %cst_54 = arith.constant 3.906250e-03 : f32
    %58 = vector.broadcast %cst_54 : f32 to vector<4x8xf32>
    %59 = arith.mulf %57, %58 : vector<4x8xf32>
    %60 = vector.extract_strided_slice %59 {offsets = [0, 0], sizes = [2, 8], strides = [1, 1]} : vector<4x8xf32> to vector<2x8xf32>
    %61 = vector.extract_strided_slice %59 {offsets = [2, 0], sizes = [2, 8], strides = [1, 1]} : vector<4x8xf32> to vector<2x8xf32>
    %62 = arith.mulf %60, %60 : vector<2x8xf32>
    %63 = arith.subf %61, %62 : vector<2x8xf32>
    %cst_55 = arith.constant 0.000000e+00 : f32
    %64 = vector.broadcast %cst_55 : f32 to vector<2x8xf32>
    %65 = arith.maximumf %63, %64 : vector<2x8xf32>
    %cst_56 = arith.constant 9.99999974E-6 : f32
    %66 = vector.broadcast %cst_56 : f32 to vector<2x8xf32>
    %67 = arith.addf %65, %66 : vector<2x8xf32>
    %68 = math.rsqrt %67 : vector<2x8xf32>
    %69 = arith.mulf %68, %6 : vector<2x8xf32>
    %70 = arith.mulf %60, %69 : vector<2x8xf32>
    %71 = arith.subf %7, %70 : vector<2x8xf32>
    %72 = tpu.concatenate %69, %71 in 0 : vector<2x8xf32>, vector<2x8xf32> -> vector<4x8xf32>
    %cst_57 = arith.constant dense<0.000000e+00> : vector<4x128xf32>
    %73 = tpu.matmul %72, %11, %cst_57 {dimension_numbers = #tpu.dot_dimension_numbers<[1], [0], [0], [1], [0, 0, 1, 1], [], []>} : vector<4x8xf32>, vector<8x128xf32>, vector<4x128xf32> -> vector<4x128xf32>
    %74 = vector.extract_strided_slice %73 {offsets = [0, 0], sizes = [2, 128], strides = [1, 1]} : vector<4x128xf32> to vector<2x128xf32>
    %75 = vector.shape_cast %74 : vector<2x128xf32> to vector<2x1x128xf32>
    %76 = vector.extract_strided_slice %73 {offsets = [2, 0], sizes = [2, 128], strides = [1, 1]} : vector<4x128xf32> to vector<2x128xf32>
    %77 = vector.shape_cast %76 : vector<2x128xf32> to vector<2x1x128xf32>
    %78 = vector.broadcast %75 : vector<2x1x128xf32> to vector<2x16x128xf32>
    %79 = arith.mulf %52, %78 : vector<2x16x128xf32>
    %80 = vector.broadcast %77 : vector<2x1x128xf32> to vector<2x16x128xf32>
    %81 = arith.addf %79, %80 : vector<2x16x128xf32>
    %cst_58 = arith.constant 0.000000e+00 : f32
    %82 = vector.broadcast %cst_58 : f32 to vector<2x1x128xf32>
    %c0_59 = arith.constant 0 : index
    %c0_60 = arith.constant 0 : index
    %c0_61 = arith.constant 0 : index
    %83 = vector.load %arg17[%c0_59, %c0_60, %c0_61] : memref<2x18x128xf32, #tpu.memory_space<vmem>>, vector<2x1x128xf32>
    tpu.vector_store %arg17[%c0_59, %c0_60, %c0_61], %82 {strides = array<i32>} : memref<2x18x128xf32, #tpu.memory_space<vmem>>, vector<2x1x128xf32>,
    %c0_62 = arith.constant 0 : index
    %c17_63 = arith.constant 17 : index
    %c0_64 = arith.constant 0 : index
    %84 = vector.load %arg17[%c0_62, %c17_63, %c0_64] : memref<2x18x128xf32, #tpu.memory_space<vmem>>, vector<2x1x128xf32>
    tpu.vector_store %arg17[%c0_62, %c17_63, %c0_64], %82 {strides = array<i32>} : memref<2x18x128xf32, #tpu.memory_space<vmem>>, vector<2x1x128xf32>,
    %c0_65 = arith.constant 0 : index
    %c1_66 = arith.constant 1 : index
    %c0_67 = arith.constant 0 : index
    %85 = vector.load %arg17[%c0_65, %c1_66, %c0_67] : memref<2x18x128xf32, #tpu.memory_space<vmem>>, vector<2x16x128xf32>
    tpu.vector_store %arg17[%c0_65, %c1_66, %c0_67], %81 {strides = array<i32>} : memref<2x18x128xf32, #tpu.memory_space<vmem>>, vector<2x16x128xf32>,
    %cst_68 = arith.constant 0.000000e+00 : f32
    %86 = vector.broadcast %cst_68 : f32 to vector<32x128xf32>
    %c0_69 = arith.constant 0 : index
    %c0_70 = arith.constant 0 : index
    %c0_71 = arith.constant 0 : index
    %87 = vector.load %arg17[%c0_69, %c0_70, %c0_71] : memref<2x18x128xf32, #tpu.memory_space<vmem>>, vector<2x16x128xf32>
    %88 = vector.shape_cast %87 : vector<2x16x128xf32> to vector<32x128xf32>
    %89 = arith.truncf %88 : vector<32x128xf32> to vector<32x128xbf16>
    %c0_72 = arith.constant 0 : index
    %c0_73 = arith.constant 0 : index
    %c0_74 = arith.constant 0 : index
    %90 = vector.load %arg8[%c0_72, %c0_73, %c0_74] : memref<3x128x128xbf16, #tpu.memory_space<vmem>>, vector<1x128x128xbf16>
    %91 = vector.shape_cast %90 : vector<1x128x128xbf16> to vector<128x128xbf16>
    %cst_75 = arith.constant dense<0.000000e+00> : vector<32x128xf32>
    %92 = tpu.matmul %89, %91, %cst_75 {dimension_numbers = #tpu.dot_dimension_numbers<[1], [0], [0], [1], [0, 0, 1, 1], [], []>} : vector<32x128xbf16>, vector<128x128xbf16>, vector<32x128xf32> -> vector<32x128xf32>
    %93 = arith.addf %86, %92 : vector<32x128xf32>
    %c0_76 = arith.constant 0 : index
    %c1_77 = arith.constant 1 : index
    %c0_78 = arith.constant 0 : index
    %94 = vector.load %arg17[%c0_76, %c1_77, %c0_78] : memref<2x18x128xf32, #tpu.memory_space<vmem>>, vector<2x16x128xf32>
    %95 = vector.shape_cast %94 : vector<2x16x128xf32> to vector<32x128xf32>
    %96 = arith.truncf %95 : vector<32x128xf32> to vector<32x128xbf16>
    %c1_79 = arith.constant 1 : index
    %c0_80 = arith.constant 0 : index
    %c0_81 = arith.constant 0 : index
    %97 = vector.load %arg8[%c1_79, %c0_80, %c0_81] : memref<3x128x128xbf16, #tpu.memory_space<vmem>>, vector<1x128x128xbf16>
    %98 = vector.shape_cast %97 : vector<1x128x128xbf16> to vector<128x128xbf16>
    %cst_82 = arith.constant dense<0.000000e+00> : vector<32x128xf32>
    %99 = tpu.matmul %96, %98, %cst_82 {dimension_numbers = #tpu.dot_dimension_numbers<[1], [0], [0], [1], [0, 0, 1, 1], [], []>} : vector<32x128xbf16>, vector<128x128xbf16>, vector<32x128xf32> -> vector<32x128xf32>
    %100 = arith.addf %93, %99 : vector<32x128xf32>
    %c0_83 = arith.constant 0 : index
    %c2_84 = arith.constant 2 : index
    %c0_85 = arith.constant 0 : index
    %101 = vector.load %arg17[%c0_83, %c2_84, %c0_85] : memref<2x18x128xf32, #tpu.memory_space<vmem>>, vector<2x16x128xf32>
    %102 = vector.shape_cast %101 : vector<2x16x128xf32> to vector<32x128xf32>
    %103 = arith.truncf %102 : vector<32x128xf32> to vector<32x128xbf16>
    %c2_86 = arith.constant 2 : index
    %c0_87 = arith.constant 0 : index
    %c0_88 = arith.constant 0 : index
    %104 = vector.load %arg8[%c2_86, %c0_87, %c0_88] : memref<3x128x128xbf16, #tpu.memory_space<vmem>>, vector<1x128x128xbf16>
    %105 = vector.shape_cast %104 : vector<1x128x128xbf16> to vector<128x128xbf16>
    %cst_89 = arith.constant dense<0.000000e+00> : vector<32x128xf32>
    %106 = tpu.matmul %103, %105, %cst_89 {dimension_numbers = #tpu.dot_dimension_numbers<[1], [0], [0], [1], [0, 0, 1, 1], [], []>} : vector<32x128xbf16>, vector<128x128xbf16>, vector<32x128xf32> -> vector<32x128xf32>
    %107 = arith.addf %100, %106 : vector<32x128xf32>
    %c0_90 = arith.constant 0 : index
    %c0_91 = arith.constant 0 : index
    %108 = vector.load %arg9[%c0_90, %c0_91] : memref<1x128xf32, #tpu.memory_space<vmem>>, vector<1x128xf32>
    %109 = vector.broadcast %108 : vector<1x128xf32> to vector<32x128xf32>
    %110 = arith.addf %107, %109 : vector<32x128xf32>
    %c0_92 = arith.constant 0 : index
    %c0_93 = arith.constant 0 : index
    %c0_94 = arith.constant 0 : index
    %111 = vector.load %arg3[%c0_92, %c0_93, %c0_94] : memref<2x16x16xf32, #tpu.memory_space<vmem>>, vector<2x16x16xf32>
    %112 = vector.shape_cast %111 : vector<2x16x16xf32> to vector<32x16xf32>
    %c0_95 = arith.constant 0 : index
    %c0_96 = arith.constant 0 : index
    %113 = vector.load %arg10[%c0_95, %c0_96] : memref<16x128xf32, #tpu.memory_space<vmem>>, vector<16x128xf32>
    %cst_97 = arith.constant dense<0.000000e+00> : vector<32x128xf32>
    %114 = tpu.matmul %112, %113, %cst_97 {dimension_numbers = #tpu.dot_dimension_numbers<[1], [0], [0], [1], [0, 0, 1, 1], [], []>} : vector<32x16xf32>, vector<16x128xf32>, vector<32x128xf32> -> vector<32x128xf32>
    %115 = arith.addf %110, %114 : vector<32x128xf32>
    %cst_98 = arith.constant 0.000000e+00 : f32
    %116 = vector.broadcast %cst_98 : f32 to vector<32x128xf32>
    %117 = arith.cmpf oge, %115, %116 : vector<32x128xf32>
    %cst_99 = arith.constant 2.000000e-01 : f32
    %118 = vector.broadcast %cst_99 : f32 to vector<32x128xf32>
    %119 = arith.mulf %118, %115 : vector<32x128xf32>
    %120 = arith.select %117, %115, %119 : vector<32x128xi1>, vector<32x128xf32>
    %121 = vector.shape_cast %120 : vector<32x128xf32> to vector<2x16x128xf32>
    %cst_100 = arith.constant dense<0.000000e+00> : vector<2x128xf32>
    %122 = vector.multi_reduction <add>, %121, %cst_100 [1] : vector<2x16x128xf32> to vector<2x128xf32>
    %123 = arith.mulf %121, %121 : vector<2x16x128xf32>
    %cst_101 = arith.constant dense<0.000000e+00> : vector<2x128xf32>
    %124 = vector.multi_reduction <add>, %123, %cst_101 [1] : vector<2x16x128xf32> to vector<2x128xf32>
    %125 = tpu.concatenate %122, %124 in 0 : vector<2x128xf32>, vector<2x128xf32> -> vector<4x128xf32>
    %cst_102 = arith.constant dense<0.000000e+00> : vector<4x8xf32>
    %126 = tpu.matmul %125, %10, %cst_102 {dimension_numbers = #tpu.dot_dimension_numbers<[1], [0], [0], [1], [0, 0, 1, 1], [], []>} : vector<4x128xf32>, vector<128x8xf32>, vector<4x8xf32> -> vector<4x8xf32>
    %cst_103 = arith.constant 3.906250e-03 : f32
    %127 = vector.broadcast %cst_103 : f32 to vector<4x8xf32>
    %128 = arith.mulf %126, %127 : vector<4x8xf32>
    %129 = vector.extract_strided_slice %128 {offsets = [0, 0], sizes = [2, 8], strides = [1, 1]} : vector<4x8xf32> to vector<2x8xf32>
    %130 = vector.extract_strided_slice %128 {offsets = [2, 0], sizes = [2, 8], strides = [1, 1]} : vector<4x8xf32> to vector<2x8xf32>
    %131 = arith.mulf %129, %129 : vector<2x8xf32>
    %132 = arith.subf %130, %131 : vector<2x8xf32>
    %cst_104 = arith.constant 0.000000e+00 : f32
    %133 = vector.broadcast %cst_104 : f32 to vector<2x8xf32>
    %134 = arith.maximumf %132, %133 : vector<2x8xf32>
    %cst_105 = arith.constant 9.99999974E-6 : f32
    %135 = vector.broadcast %cst_105 : f32 to vector<2x8xf32>
    %136 = arith.addf %134, %135 : vector<2x8xf32>
    %137 = math.rsqrt %136 : vector<2x8xf32>
    %138 = arith.mulf %137, %8 : vector<2x8xf32>
    %139 = arith.mulf %129, %138 : vector<2x8xf32>
    %140 = arith.subf %9, %139 : vector<2x8xf32>
    %141 = tpu.concatenate %138, %140 in 0 : vector<2x8xf32>, vector<2x8xf32> -> vector<4x8xf32>
    %cst_106 = arith.constant dense<0.000000e+00> : vector<4x128xf32>
    %142 = tpu.matmul %141, %11, %cst_106 {dimension_numbers = #tpu.dot_dimension_numbers<[1], [0], [0], [1], [0, 0, 1, 1], [], []>} : vector<4x8xf32>, vector<8x128xf32>, vector<4x128xf32> -> vector<4x128xf32>
    %143 = vector.extract_strided_slice %142 {offsets = [0, 0], sizes = [2, 128], strides = [1, 1]} : vector<4x128xf32> to vector<2x128xf32>
    %144 = vector.shape_cast %143 : vector<2x128xf32> to vector<2x1x128xf32>
    %145 = vector.extract_strided_slice %142 {offsets = [2, 0], sizes = [2, 128], strides = [1, 1]} : vector<4x128xf32> to vector<2x128xf32>
    %146 = vector.shape_cast %145 : vector<2x128xf32> to vector<2x1x128xf32>
    %147 = vector.broadcast %144 : vector<2x1x128xf32> to vector<2x16x128xf32>
    %148 = arith.mulf %121, %147 : vector<2x16x128xf32>
    %149 = vector.broadcast %146 : vector<2x1x128xf32> to vector<2x16x128xf32>
    %150 = arith.addf %148, %149 : vector<2x16x128xf32>
    %c0_107 = arith.constant 0 : index
    %c0_108 = arith.constant 0 : index
    %c0_109 = arith.constant 0 : index
    %151 = vector.load %arg15[%c0_107, %c0_108, %c0_109] : memref<2x16x128xf32, #tpu.memory_space<vmem>>, vector<2x16x128xf32>
    tpu.vector_store %arg15[%c0_107, %c0_108, %c0_109], %150 {strides = array<i32>} : memref<2x16x128xf32, #tpu.memory_space<vmem>>, vector<2x16x128xf32>,
    return
  }
  func.func @transform_0(%arg0: i32) -> (i32, i32, i32) {
    %c0_i32 = arith.constant 0 : i32
    %c0_i32_0 = arith.constant 0 : i32
    %c0_i32_1 = arith.constant 0 : i32
    return %arg0, %c0_i32, %c0_i32_0 : i32, i32, i32
  }
  func.func @transform_1(%arg0: i32) -> (i32, i32, i32) {
    %c0_i32 = arith.constant 0 : i32
    %c0_i32_0 = arith.constant 0 : i32
    %c0_i32_1 = arith.constant 0 : i32
    return %arg0, %c0_i32, %c0_i32_0 : i32, i32, i32
  }
  func.func @transform_2(%arg0: i32) -> (i32, i32, i32) {
    %c0_i32 = arith.constant 0 : i32
    %c0_i32_0 = arith.constant 0 : i32
    %c0_i32_1 = arith.constant 0 : i32
    return %arg0, %c0_i32, %c0_i32_0 : i32, i32, i32
  }
  func.func @transform_3(%arg0: i32) -> (i32, i32) {
    %c0_i32 = arith.constant 0 : i32
    %c0_i32_0 = arith.constant 0 : i32
    return %arg0, %c0_i32 : i32, i32
  }
  func.func @transform_4(%arg0: i32) -> (i32, i32, i32) {
    %c0_i32 = arith.constant 0 : i32
    %c0_i32_0 = arith.constant 0 : i32
    %c0_i32_1 = arith.constant 0 : i32
    %c0_i32_2 = arith.constant 0 : i32
    return %c0_i32, %c0_i32_0, %c0_i32_1 : i32, i32, i32
  }
  func.func @transform_5(%arg0: i32) -> (i32, i32) {
    %c0_i32 = arith.constant 0 : i32
    %c0_i32_0 = arith.constant 0 : i32
    %c0_i32_1 = arith.constant 0 : i32
    return %c0_i32, %c0_i32_0 : i32, i32
  }
  func.func @transform_6(%arg0: i32) -> (i32, i32) {
    %c0_i32 = arith.constant 0 : i32
    %c0_i32_0 = arith.constant 0 : i32
    %c0_i32_1 = arith.constant 0 : i32
    return %c0_i32, %c0_i32_0 : i32, i32
  }
  func.func @transform_7(%arg0: i32) -> (i32, i32, i32) {
    %c0_i32 = arith.constant 0 : i32
    %c0_i32_0 = arith.constant 0 : i32
    %c0_i32_1 = arith.constant 0 : i32
    %c0_i32_2 = arith.constant 0 : i32
    return %c0_i32, %c0_i32_0, %c0_i32_1 : i32, i32, i32
  }
  func.func @transform_8(%arg0: i32) -> (i32, i32) {
    %c0_i32 = arith.constant 0 : i32
    %c0_i32_0 = arith.constant 0 : i32
    %c0_i32_1 = arith.constant 0 : i32
    return %c0_i32, %c0_i32_0 : i32, i32
  }
  func.func @transform_9(%arg0: i32) -> (i32, i32) {
    %c0_i32 = arith.constant 0 : i32
    %c0_i32_0 = arith.constant 0 : i32
    %c0_i32_1 = arith.constant 0 : i32
    return %c0_i32, %c0_i32_0 : i32, i32
  }
  func.func @transform_10(%arg0: i32) -> (i32, i32) {
    %c0_i32 = arith.constant 0 : i32
    %c0_i32_0 = arith.constant 0 : i32
    %c0_i32_1 = arith.constant 0 : i32
    return %c0_i32, %c0_i32_0 : i32, i32
  }
  func.func @transform_11(%arg0: i32) -> (i32, i32) {
    %c0_i32 = arith.constant 0 : i32
    %c0_i32_0 = arith.constant 0 : i32
    %c0_i32_1 = arith.constant 0 : i32
    return %c0_i32, %c0_i32_0 : i32, i32
  }
  func.func @transform_12(%arg0: i32) -> (i32, i32) {
    %c0_i32 = arith.constant 0 : i32
    %c0_i32_0 = arith.constant 0 : i32
    %c0_i32_1 = arith.constant 0 : i32
    return %c0_i32, %c0_i32_0 : i32, i32
  }
  func.func @transform_13(%arg0: i32) -> (i32, i32) {
    %c0_i32 = arith.constant 0 : i32
    %c0_i32_0 = arith.constant 0 : i32
    %c0_i32_1 = arith.constant 0 : i32
    return %c0_i32, %c0_i32_0 : i32, i32
  }
  func.func @transform_14(%arg0: i32) -> (i32, i32, i32) {
    %c0_i32 = arith.constant 0 : i32
    %c0_i32_0 = arith.constant 0 : i32
    %c0_i32_1 = arith.constant 0 : i32
    return %arg0, %c0_i32, %c0_i32_0 : i32, i32, i32
  }
}

</mosaic_0001>

<llo_original>
// kernel: tpu_custom_call.1
$region0: #{tpu_custom_call.1}
  #allocation0 [shape = 'u32[]', space=smem, size = 0x4, offset = 0x4, fixed_abs, tag = 'smem constant byte address 0x4 - core index']
  #allocation1 [shape = 'u32[144,128]{1,0:T(1,128)}', space=vmem, size = 0x12000, scoped, tag = 'internal scratch']
  #allocation2 [shape = 'f32[2,18,64]{2,1,0:T(8,128)}', space=vmem, size = 0x6000, scoped, tag = 'scratch operand']
  #allocation3 [shape = 'f32[2,18,128]{2,1,0:T(8,128)}', space=vmem, size = 0x6000, scoped, tag = 'scratch operand']
  %s0 = inlined_call_operand.vmem [shape: f32[2,16,64], index: 0, kind: input, shape index: {}]
  %s1 = inlined_call_operand.hbm [shape: f32[2,16,16], index: 1, kind: input, shape index: {}]
  %s2 = inlined_call_operand.hbm [shape: f32[2,16,16], index: 2, kind: input, shape index: {}]
  %s3 = inlined_call_operand.hbm [shape: f32[2,32], index: 3, kind: input, shape index: {}]
  %s4 = inlined_call_operand.vmem [shape: bf16[3,64,128], index: 4, kind: input, shape index: {}]
  %s5 = inlined_call_operand.vmem [shape: f32[1,128], index: 5, kind: input, shape index: {}]
  %s6 = inlined_call_operand.hbm [shape: f32[16,128], index: 6, kind: input, shape index: {}]
  %s7 = inlined_call_operand.hbm [shape: bf16[3,128,128], index: 7, kind: input, shape index: {}]
  %s8 = inlined_call_operand.hbm [shape: f32[1,128], index: 8, kind: input, shape index: {}]
  %s9 = inlined_call_operand.hbm [shape: f32[16,128], index: 9, kind: input, shape index: {}]
  %s10 = inlined_call_operand.vmem [shape: f32[32,32], index: 10, kind: input, shape index: {}]
  %s11 = inlined_call_operand.hbm [shape: f32[1,32], index: 11, kind: input, shape index: {}]
  %s12 = inlined_call_operand.vmem [shape: f32[128,8], index: 12, kind: input, shape index: {}]
  %s13 = inlined_call_operand.vmem [shape: f32[8,128], index: 13, kind: input, shape index: {}]
  %s14 = inlined_call_operand.hbm [shape: f32[2,16,128], index: 14, kind: output, shape index: {}]
  %s15 = sld [smem:[#allocation0]]
  $region98: #{tpu_custom_call.1} parent=0
    _
  %s17 = ssub.s32 1, %s15
  %s18 = scalar_select 0, %s17, %s15
  $region1: #{tpu_custom_call.1} parent=0
    #allocation4 [shape = 'u8[16384]{0}', space=vmem, size = 0x4000, scoped, tag = 'input window, operand 1, single buffered']
    #allocation5 [shape = 's32[1]{0}', space=sflag, size = 0x4, scoped, tag = 'scoped memory for tpu_custom_call.1']
    #allocation6 [shape = 's32[1]{0}', space=sflag, size = 0x4, scoped, tag = 'scoped memory for tpu_custom_call.1']
    #allocation7 [shape = 'u8[16384]{0}', space=vmem, size = 0x4000, scoped, tag = 'input window, operand 2, single buffered']
    #allocation8 [shape = 's32[1]{0}', space=sflag, size = 0x4, scoped, tag = 'scoped memory for tpu_custom_call.1']
    #allocation9 [shape = 'u8[1024]{0}', space=vmem, size = 0x400, scoped, tag = 'input window, operand 3, single buffered']
    #allocation10 [shape = 'u8[8192]{0}', space=vmem, size = 0x2000, scoped, tag = 'input window, operand 6, single buffered']
    #allocation11 [shape = 's32[1]{0}', space=sflag, size = 0x4, scoped, tag = 'scoped memory for tpu_custom_call.1']
    #allocation12 [shape = 'u8[98304]{0}', space=vmem, size = 0x18000, scoped, tag = 'input window, operand 7, single buffered']
    #allocation13 [shape = 'u8[512]{0}', space=vmem, size = 0x400, scoped, tag = 'input window, operand 8, single buffered']
    #allocation14 [shape = 's32[1]{0}', space=sflag, size = 0x4, scoped, tag = 'scoped memory for tpu_custom_call.1']
    #allocation15 [shape = 'u8[8192]{0}', space=vmem, size = 0x2000, scoped, tag = 'input window, operand 9, single buffered']
    #allocation16 [shape = 'u8[512]{0}', space=vmem, size = 0x400, scoped, tag = 'input window, operand 11, single buffered']
    #allocation17 [shape = 's32[1]{0}', space=sflag, size = 0x4, scoped, tag = 'scoped memory for tpu_custom_call.1']
    #allocation18 [shape = 'u8[16384]{0}', space=vmem, size = 0x4000, scoped, tag = 'output window, operand 0, single buffered']
    %19 = vsyncpa [#allocation5], 0
    %20 = vsyncpa [#allocation8], 0
    %21 = vsyncpa [#allocation11], 0
    %22 = vsyncpa [#allocation14], 0
    %23 = vsyncpa [#allocation17], 0
    %24 = vsyncpa [#allocation6], 0
    // Predicated region
    $region2: #{tpu_custom_call.1} parent=1 // pred_check
      _
    $region3: #{tpu_custom_call.1} parent=1 // pred_check_branch
      %26 = sbr.rel (0) target = $region5
    $region4: #{tpu_custom_call.1} parent=1 // pred_region
      _
    $region5: #{tpu_custom_call.1} parent=1 // pred_fallthru
      _
    // Predicated region
    $region6: #{tpu_custom_call.1} parent=1 // pred_check
      _
    $region7: #{tpu_custom_call.1} parent=1 // pred_check_branch
      %28 = sbr.rel (0) target = $region9
    $region8: #{tpu_custom_call.1} parent=1 // pred_region
      %s30 = ssub.s32 512, 512
      %31 = vsyncadd [#allocation5], %s30
      %s32 = sshll.u32 [#allocation4], 4
      %s33 = int_to_ptr.vmem [resolvable:$true] %s32
      %38 = dma.hbm_to_vmem [thread:$0]  %s1, 512, %s33, [#allocation5], 128, 128, 8
    $region9: #{tpu_custom_call.1} parent=1 // pred_fallthru
      _
    // Predicated region
    $region10: #{tpu_custom_call.1} parent=1 // pred_check
      _
    $region11: #{tpu_custom_call.1} parent=1 // pred_check_branch
      %40 = sbr.rel (0) target = $region13
    $region12: #{tpu_custom_call.1} parent=1 // pred_region
      %s42 = ssub.s32 512, 512
      %43 = vsyncadd [#allocation8], %s42
      %s44 = sshll.u32 [#allocation7], 4
      %s45 = int_to_ptr.vmem [resolvable:$true] %s44
      %50 = dma.hbm_to_vmem [thread:$0]  %s2, 512, %s45, [#allocation8], 128, 128, 8
    $region13: #{tpu_custom_call.1} parent=1 // pred_fallthru
      _
    // Predicated region
    $region14: #{tpu_custom_call.1} parent=1 // pred_check
      _
    $region15: #{tpu_custom_call.1} parent=1 // pred_check_branch
      %52 = sbr.rel (0) target = $region17
    $region16: #{tpu_custom_call.1} parent=1 // pred_region
      %s54 = ssub.s32 32, 32
      %55 = vsyncadd [#allocation8], %s54
      %s57 = sshll.u32 [#allocation9], 4
      %s58 = int_to_ptr.vmem [resolvable:$true] %s57
      %60 = dma.hbm_to_vmem [thread:$0]  %s3, 32, %s58, [#allocation8]
    $region17: #{tpu_custom_call.1} parent=1 // pred_fallthru
      _
    // Predicated region
    $region18: #{tpu_custom_call.1} parent=1 // pred_check
      _
    $region19: #{tpu_custom_call.1} parent=1 // pred_check_branch
      %62 = sbr.rel (0) target = $region21
    $region20: #{tpu_custom_call.1} parent=1 // pred_region
      _
    $region21: #{tpu_custom_call.1} parent=1 // pred_fallthru
      _
    // Predicated region
    $region22: #{tpu_custom_call.1} parent=1 // pred_check
      _
    $region23: #{tpu_custom_call.1} parent=1 // pred_check_branch
      %64 = sbr.rel (0) target = $region25
    $region24: #{tpu_custom_call.1} parent=1 // pred_region
      _
    $region25: #{tpu_custom_call.1} parent=1 // pred_fallthru
      _
    // Predicated region
    $region26: #{tpu_custom_call.1} parent=1 // pred_check
      _
    $region27: #{tpu_custom_call.1} parent=1 // pred_check_branch
      %66 = sbr.rel (0) target = $region29
    $region28: #{tpu_custom_call.1} parent=1 // pred_region
      %s68 = ssub.s32 256, 256
      %69 = vsyncadd [#allocation11], %s68
      %s70 = sshll.u32 [#allocation10], 4
      %s71 = int_to_ptr.vmem [resolvable:$true] %s70
      %76 = dma.hbm_to_vmem [thread:$0]  %s6, 256, %s71, [#allocation11], 128, 128, 8
    $region29: #{tpu_custom_call.1} parent=1 // pred_fallthru
      _
    // Predicated region
    $region30: #{tpu_custom_call.1} parent=1 // pred_check
      _
    $region31: #{tpu_custom_call.1} parent=1 // pred_check_branch
      %78 = sbr.rel (0) target = $region33
    $region32: #{tpu_custom_call.1} parent=1 // pred_region
      %s80 = ssub.s32 3072, 3072
      %81 = vsyncadd [#allocation11], %s80
      %s82 = sshll.u32 [#allocation12], 4
      %s83 = int_to_ptr.vmem [resolvable:$true] %s82
      %88 = dma.hbm_to_vmem [thread:$0]  %s7, 3072, %s83, [#allocation11], 64, 64, 4
    $region33: #{tpu_custom_call.1} parent=1 // pred_fallthru
      _
    // Predicated region
    $region34: #{tpu_custom_call.1} parent=1 // pred_check
      _
    $region35: #{tpu_custom_call.1} parent=1 // pred_check_branch
      %90 = sbr.rel (0) target = $region37
    $region36: #{tpu_custom_call.1} parent=1 // pred_region
      %s92 = ssub.s32 16, 16
      %93 = vsyncadd [#allocation14], %s92
      %s95 = sshll.u32 [#allocation13], 4
      %s96 = int_to_ptr.vmem [resolvable:$true] %s95
      %98 = dma.hbm_to_vmem [thread:$0]  %s8, 16, %s96, [#allocation14]
    $region37: #{tpu_custom_call.1} parent=1 // pred_fallthru
      _
    // Predicated region
    $region38: #{tpu_custom_call.1} parent=1 // pred_check
      _
    $region39: #{tpu_custom_call.1} parent=1 // pred_check_branch
      %100 = sbr.rel (0) target = $region41
    $region40: #{tpu_custom_call.1} parent=1 // pred_region
      %s102 = ssub.s32 256, 256
      %103 = vsyncadd [#allocation14], %s102
      %s104 = sshll.u32 [#allocation15], 4
      %s105 = int_to_ptr.vmem [resolvable:$true] %s104
      %110 = dma.hbm_to_vmem [thread:$0]  %s9, 256, %s105, [#allocation14], 128, 128, 8
    $region41: #{tpu_custom_call.1} parent=1 // pred_fallthru
      _
    // Predicated region
    $region42: #{tpu_custom_call.1} parent=1 // pred_check
      _
    $region43: #{tpu_custom_call.1} parent=1 // pred_check_branch
      %112 = sbr.rel (0) target = $region45
    $region44: #{tpu_custom_call.1} parent=1 // pred_region
      _
    $region45: #{tpu_custom_call.1} parent=1 // pred_fallthru
      _
    // Predicated region
    $region46: #{tpu_custom_call.1} parent=1 // pred_check
      _
    $region47: #{tpu_custom_call.1} parent=1 // pred_check_branch
      %114 = sbr.rel (0) target = $region49
    $region48: #{tpu_custom_call.1} parent=1 // pred_region
      %s116 = ssub.s32 16, 16
      %117 = vsyncadd [#allocation17], %s116
      %s119 = sshll.u32 [#allocation16], 4
      %s120 = int_to_ptr.vmem [resolvable:$true] %s119
      %122 = dma.hbm_to_vmem [thread:$0]  %s11, 16, %s120, [#allocation17]
    $region49: #{tpu_custom_call.1} parent=1 // pred_fallthru
      _
    // Predicated region
    $region50: #{tpu_custom_call.1} parent=1 // pred_check
      _
    $region51: #{tpu_custom_call.1} parent=1 // pred_check_branch
      %124 = sbr.rel (0) target = $region53
    $region52: #{tpu_custom_call.1} parent=1 // pred_region
      _
    $region53: #{tpu_custom_call.1} parent=1 // pred_fallthru
      _
    // Predicated region
    $region54: #{tpu_custom_call.1} parent=1 // pred_check
      _
    $region55: #{tpu_custom_call.1} parent=1 // pred_check_branch
      %126 = sbr.rel (0) target = $region57
    $region56: #{tpu_custom_call.1} parent=1 // pred_region
      _
    $region57: #{tpu_custom_call.1} parent=1 // pred_fallthru
      _
    // Predicated region
    $region58: #{tpu_custom_call.1} parent=1 // pred_check
      _
    $region59: #{tpu_custom_call.1} parent=1 // pred_check_branch
      %128 = sbr.rel (0) target = $region61
    $region60: #{tpu_custom_call.1} parent=1 // pred_region
      %129 = dma.done [#allocation5], 512
    $region61: #{tpu_custom_call.1} parent=1 // pred_fallthru
      _
    // Predicated region
    $region62: #{tpu_custom_call.1} parent=1 // pred_check
      _
    $region63: #{tpu_custom_call.1} parent=1 // pred_check_branch
      %131 = sbr.rel (0) target = $region65
    $region64: #{tpu_custom_call.1} parent=1 // pred_region
      %132 = dma.done [#allocation8], 512
    $region65: #{tpu_custom_call.1} parent=1 // pred_fallthru
      _
    // Predicated region
    $region66: #{tpu_custom_call.1} parent=1 // pred_check
      _
    $region67: #{tpu_custom_call.1} parent=1 // pred_check_branch
      %134 = sbr.rel (0) target = $region69
    $region68: #{tpu_custom_call.1} parent=1 // pred_region
      %135 = dma.done [#allocation8], 32
    $region69: #{tpu_custom_call.1} parent=1 // pred_fallthru
      _
    // Predicated region
    $region70: #{tpu_custom_call.1} parent=1 // pred_check
      _
    $region71: #{tpu_custom_call.1} parent=1 // pred_check_branch
      %137 = sbr.rel (0) target = $region73
    $region72: #{tpu_custom_call.1} parent=1 // pred_region
      %138 = dma.done [#allocation11], 256
    $region73: #{tpu_custom_call.1} parent=1 // pred_fallthru
      _
    // Predicated region
    $region74: #{tpu_custom_call.1} parent=1 // pred_check
      _
    $region75: #{tpu_custom_call.1} parent=1 // pred_check_branch
      %140 = sbr.rel (0) target = $region77
    $region76: #{tpu_custom_call.1} parent=1 // pred_region
      %141 = dma.done [#allocation11], 3072
    $region77: #{tpu_custom_call.1} parent=1 // pred_fallthru
      _
    // Predicated region
    $region78: #{tpu_custom_call.1} parent=1 // pred_check
      _
    $region79: #{tpu_custom_call.1} parent=1 // pred_check_branch
      %143 = sbr.rel (0) target = $region81
    $region80: #{tpu_custom_call.1} parent=1 // pred_region
      %144 = dma.done [#allocation14], 16
    $region81: #{tpu_custom_call.1} parent=1 // pred_fallthru
      _
    // Predicated region
    $region82: #{tpu_custom_call.1} parent=1 // pred_check
      _
    $region83: #{tpu_custom_call.1} parent=1 // pred_check_branch
      %146 = sbr.rel (0) target = $region85
    $region84: #{tpu_custom_call.1} parent=1 // pred_region
      %147 = dma.done [#allocation14], 256
    $region85: #{tpu_custom_call.1} parent=1 // pred_fallthru
      _
    // Predicated region
    $region86: #{tpu_custom_call.1} parent=1 // pred_check
      _
    $region87: #{tpu_custom_call.1} parent=1 // pred_check_branch
      %149 = sbr.rel (0) target = $region89
    $region88: #{tpu_custom_call.1} parent=1 // pred_region
      %150 = dma.done [#allocation17], 16
    $region89: #{tpu_custom_call.1} parent=1 // pred_fallthru
      _
    %v152 = vld [vmem:[#allocation9] sm:$0x3]
    %v153 = vld [vmem:[%s10] sm:$0xff]
    %v154 = vld [vmem:[%s10 + $0x8] sm:$0xff]
    %v155 = vld [vmem:[%s10 + $0x10] sm:$0xff]
    %v156 = vld [vmem:[%s10 + $0x18] sm:$0xff]
    %v157 = vld [vmem:[#allocation16] sm:$0x1]
    %v159 = vlaneseq
    %v160 = vshrl.u32 %v159, 7
    %v161 = vsub.s32 0, %v160
    %v162 = vrot.slane %v157, %v161
    %vm164 = vcmask 261120
    %v166 = vsel %vm164, %v152, 0
    %168 = vmatprep.subr.mxu0 0.0
    %169 = vmatpush1.msra.mxu0 %v153
    %170 = vmatprep.subr.mxu0 0.0
    %171 = vmatpush1.msra.mxu0 %v154
    %172 = vmatprep.subr.mxu0 0.0
    %173 = vmatpush1.msra.mxu0 %v155
    %174 = vmatprep.subr.mxu0 0.0
    %175 = vmatpush1.msra.mxu0 %v156
    %176 = vmatprep.subr.mxu0 0.0
    %177 = vmatpush1.msra.mxu0 0.0
    %178 = vmatprep.subr.mxu0 0.0
    %179 = vmatpush1.msra.mxu0 0.0
    %180 = vmatprep.subr.mxu0 0.0
    %181 = vmatpush1.msra.mxu0 0.0
    %182 = vmatprep.subr.mxu0 0.0
    %183 = vmatpush1.msra.mxu0 0.0
    %184 = vmatprep.subr.mxu0 0.0
    %185 = vmatpush1.msra.mxu0 0.0
    %186 = vmatprep.subr.mxu0 0.0
    %187 = vmatpush1.msra.mxu0 0.0
    %188 = vmatprep.subr.mxu0 0.0
    %189 = vmatpush1.msra.mxu0 0.0
    %190 = vmatprep.subr.mxu0 0.0
    %191 = vmatpush1.msra.mxu0 0.0
    %192 = vmatprep.subr.mxu0 0.0
    %193 = vmatpush1.msra.mxu0 0.0
    %194 = vmatprep.subr.mxu0 0.0
    %195 = vmatpush1.msra.mxu0 0.0
    %196 = vmatprep.subr.mxu0 0.0
    %197 = vmatpush1.msra.mxu0 0.0
    %198 = vmatprep.subr.mxu0 0.0
    %199 = vmatpush1.msra.mxu0 0.0
    %200 = vmatprep.subr.mxu0 0.0
    %201 = vmatpush1.msra.mxu0 0.0
    %202 = vmatprep.subr.mxu0 0.0
    %203 = vmatpush1.msra.mxu0 0.0
    %204 = vmatprep.subr.mxu0 0.0
    %205 = vmatpush1.msra.mxu0 0.0
    %206 = vmatprep.subr.mxu0 0.0
    %207 = vmatpush1.msra.mxu0 0.0
    %208 = vmatprep.subr.mxu0 0.0
    %209 = vmatpush1.msra.mxu0 0.0
    %210 = vmatprep.subr.mxu0 0.0
    %211 = vmatpush1.msra.mxu0 0.0
    %212 = vmatprep.subr.mxu0 0.0
    %213 = vmatpush1.msra.mxu0 0.0
    %214 = vmatprep.subr.mxu0 0.0
    %215 = vmatpush1.msra.mxu0 0.0
    %216 = vmatprep.subr.mxu0 0.0
    %217 = vmatpush1.msra.mxu0 0.0
    %218 = vmatprep.subr.mxu0 0.0
    %219 = vmatpush1.msra.mxu0 0.0
    %220 = vmatprep.subr.mxu0 0.0
    %221 = vmatpush1.msra.mxu0 0.0
    %222 = vmatprep.subr.mxu0 0.0
    %223 = vmatpush1.msra.mxu0 0.0
    %224 = vmatprep.subr.mxu0 0.0
    %225 = vmatpush1.msra.mxu0 0.0
    %226 = vmatprep.subr.mxu0 0.0
    %227 = vmatpush1.msra.mxu0 0.0
    %228 = vmatprep.subr.mxu0 0.0
    %229 = vmatpush1.msra.mxu0 0.0
    %230 = vmatprep.subr.mxu0 0.0
    %231 = vmatpush1.msra.mxu0 0.0
    %232 = vmatprep.mubr.f32.mxu0 0.0
    %233 = vmatmul.mubr.f32.gmra.mrb[0].mxu0 %v166
    %v234 = vpop.f32.mrb[0].mxu0
    %v235 = vadd.f32 %v162, %v234
    %v236 = vpop.f32.mrb[0].mxu0
    %237 = vdwg.mxu0
    %v238 = vld [vmem:[%s12] sm:$0xff]
    %v239 = vld [vmem:[%s12 + $0x8] sm:$0xff]
    %v240 = vld [vmem:[%s12 + $0x10] sm:$0xff]
    %v241 = vld [vmem:[%s12 + $0x18] sm:$0xff]
    %v242 = vld [vmem:[%s12 + $0x20] sm:$0xff]
    %v243 = vld [vmem:[%s12 + $0x28] sm:$0xff]
    %v244 = vld [vmem:[%s12 + $0x30] sm:$0xff]
    %v245 = vld [vmem:[%s12 + $0x38] sm:$0xff]
    %v246 = vld [vmem:[%s12 + $0x40] sm:$0xff]
    %v247 = vld [vmem:[%s12 + $0x48] sm:$0xff]
    %v248 = vld [vmem:[%s12 + $0x50] sm:$0xff]
    %v249 = vld [vmem:[%s12 + $0x58] sm:$0xff]
    %v250 = vld [vmem:[%s12 + $0x60] sm:$0xff]
    %v251 = vld [vmem:[%s12 + $0x68] sm:$0xff]
    %v252 = vld [vmem:[%s12 + $0x70] sm:$0xff]
    %v253 = vld [vmem:[%s12 + $0x78] sm:$0xff]
    %v254 = vld [vmem:[%s13] sm:$0xff]
    %vm255 = vcmask 516096
    %256 = vst.msk [vmem:[#allocation2] sm:$0x1] %vm255, 0.0
    %257 = vst.msk [vmem:[#allocation2 + $0x18] sm:$0x1] %vm255, 0.0
    %258 = vst.msk [vmem:[#allocation2 + $0x11] sm:$0x1] %vm255, 0.0
    %259 = vst.msk [vmem:[#allocation2 + $0x29] sm:$0x1] %vm255, 0.0
    %v260 = vld [vmem:[%s0] sm:$0xff]
    %v261 = vld [vmem:[%s0 + $0x8] sm:$0xff]
    %v262 = vld [vmem:[%s0 + $0x10] sm:$0xff]
    %v263 = vld [vmem:[%s0 + $0x18] sm:$0xff]
    %vm264 = vcmask 523264
    %265 = vst.msk [vmem:[#allocation2 + $0x1] sm:$0xff] %vm264, %v260
    %266 = vst.msk [vmem:[#allocation2 + $0x9] sm:$0xff] %vm264, %v261
    %267 = vst.msk [vmem:[#allocation2 + $0x19] sm:$0xff] %vm264, %v262
    %268 = vst.msk [vmem:[#allocation2 + $0x21] sm:$0xff] %vm264, %v263
    %v269 = vld [vmem:[#allocation2] sm:$0xff]
    %v270 = vld [vmem:[#allocation2 + $0x8] sm:$0xff]
    %v271 = vld [vmem:[#allocation2 + $0x18] sm:$0xff]
    %v272 = vld [vmem:[#allocation2 + $0x20] sm:$0xff]
    %v273 = vpack.c.bf16 %v270, %v269
    %v274 = vpack.c.bf16 %v272, %v271
    %v275 = vld [vmem:[%s4] sm:$0xf]
    %v276 = vld [vmem:[%s4 + $0x4] sm:$0xf]
    %v277 = vld [vmem:[%s4 + $0x8] sm:$0xf]
    %v278 = vld [vmem:[%s4 + $0xc] sm:$0xf]
    %v279 = vld [vmem:[%s4 + $0x10] sm:$0xf]
    %v280 = vld [vmem:[%s4 + $0x14] sm:$0xf]
    %v281 = vld [vmem:[%s4 + $0x18] sm:$0xf]
    %v282 = vld [vmem:[%s4 + $0x1c] sm:$0xf]
    %v283 = vld [vmem:[#allocation2 + $0x1] sm:$0xff]
    %v284 = vld [vmem:[#allocation2 + $0x9] sm:$0xff]
    %v285 = vld [vmem:[#allocation2 + $0x19] sm:$0xff]
    %v286 = vld [vmem:[#allocation2 + $0x21] sm:$0xff]
    %v287 = vpack.c.bf16 %v284, %v283
    %v288 = vpack.c.bf16 %v286, %v285
    %s289 = scalar_lea.vmem %s4, 32
    %v290 = vld [vmem:[%s289] sm:$0xf]
    %v291 = vld [vmem:[%s289 + $0x4] sm:$0xf]
    %v292 = vld [vmem:[%s289 + $0x8] sm:$0xf]
    %v293 = vld [vmem:[%s289 + $0xc] sm:$0xf]
    %v294 = vld [vmem:[%s289 + $0x10] sm:$0xf]
    %v295 = vld [vmem:[%s289 + $0x14] sm:$0xf]
    %v296 = vld [vmem:[%s289 + $0x18] sm:$0xf]
    %v297 = vld [vmem:[%s289 + $0x1c] sm:$0xf]
    %v306 = vunpack.c.l.b16 %v290
    %v307 = vunpack.c.l.b16 %v291
    %v308 = vunpack.c.l.b16 %v292
    %v309 = vunpack.c.l.b16 %v293
    %v310 = vunpack.c.l.b16 %v294
    %v311 = vunpack.c.l.b16 %v295
    %v312 = vunpack.c.l.b16 %v296
    %v313 = vunpack.c.l.b16 %v297
    %v314 = vpack.c.b16 %v307, %v306
    %v315 = vpack.c.b16 %v309, %v308
    %v316 = vpack.c.b16 %v311, %v310
    %v317 = vpack.c.b16 %v313, %v312
    %v323 = vsel %vm264, %v287, 0
    %v326 = vsel %vm264, %v288, 0
    %328 = vmatprep.subr.bf16.mxu0 0
    %329 = vmatpush1.bf16.msra.mxu0 %v314
    %330 = vmatprep.subr.bf16.mxu0 0
    %331 = vmatpush1.bf16.msra.mxu0 %v315
    %332 = vmatprep.subr.bf16.mxu0 0
    %333 = vmatpush1.bf16.msra.mxu0 %v316
    %334 = vmatprep.subr.bf16.mxu0 0
    %335 = vmatpush1.bf16.msra.mxu0 %v317
    %336 = vmatprep.subr.bf16.mxu0 0
    %337 = vmatpush1.bf16.msra.mxu0 0
    %338 = vmatprep.subr.bf16.mxu0 0
    %339 = vmatpush1.bf16.msra.mxu0 0
    %340 = vmatprep.subr.bf16.mxu0 0
    %341 = vmatpush1.bf16.msra.mxu0 0
    %342 = vmatprep.subr.bf16.mxu0 0
    %343 = vmatpush1.bf16.msra.mxu0 0
    %344 = vmatprep.subr.bf16.mxu0 0
    %345 = vmatpush1.bf16.msra.mxu0 0
    %346 = vmatprep.subr.bf16.mxu0 0
    %347 = vmatpush1.bf16.msra.mxu0 0
    %348 = vmatprep.subr.bf16.mxu0 0
    %349 = vmatpush1.bf16.msra.mxu0 0
    %350 = vmatprep.subr.bf16.mxu0 0
    %351 = vmatpush1.bf16.msra.mxu0 0
    %352 = vmatprep.subr.bf16.mxu0 0
    %353 = vmatpush1.bf16.msra.mxu0 0
    %354 = vmatprep.subr.bf16.mxu0 0
    %355 = vmatpush1.bf16.msra.mxu0 0
    %356 = vmatprep.subr.bf16.mxu0 0
    %357 = vmatpush1.bf16.msra.mxu0 0
    %358 = vmatprep.subr.bf16.mxu0 0
    %359 = vmatpush1.bf16.msra.mxu0 0
    %360 = vmatprep.mubr.bf16.mxu0 0
    %361 = vmatmul.mubr.bf16.gmra.mrb[0].mxu0 %v323
    %v362 = vpop.f32.mrb[0].mxu0
    %v363 = vadd.f32 0.0, %v362
    %v364 = vpop.f32.mrb[0].mxu0
    %v365 = vpop.f32.mrb[0].mxu0
    %v366 = vadd.f32 0.0, %v365
    %v367 = vpop.f32.mrb[0].mxu0
    %368 = vmatprep.mubr.bf16.mxu0 0
    %369 = vmatmul.mubr.bf16.gmra.mrb[0].mxu0 %v326
    %v370 = vpop.f32.mrb[0].mxu0
    %v371 = vadd.f32 0.0, %v370
    %v372 = vpop.f32.mrb[0].mxu0
    %v373 = vpop.f32.mrb[0].mxu0
    %v374 = vadd.f32 0.0, %v373
    %v375 = vpop.f32.mrb[0].mxu0
    %376 = vdwg.mxu0
    %v385 = vunpack.c.l.b16 %v275
    %v386 = vunpack.c.l.b16 %v276
    %v387 = vunpack.c.l.b16 %v277
    %v388 = vunpack.c.l.b16 %v278
    %v389 = vunpack.c.l.b16 %v279
    %v390 = vunpack.c.l.b16 %v280
    %v391 = vunpack.c.l.b16 %v281
    %v392 = vunpack.c.l.b16 %v282
    %v393 = vpack.c.b16 %v386, %v385
    %v394 = vpack.c.b16 %v388, %v387
    %v395 = vpack.c.b16 %v390, %v389
    %v396 = vpack.c.b16 %v392, %v391
    %v402 = vsel %vm264, %v273, 0
    %v405 = vsel %vm264, %v274, 0
    %407 = vmatprep.subr.bf16.mxu0 0
    %408 = vmatpush1.bf16.msra.mxu0 %v393
    %409 = vmatprep.subr.bf16.mxu0 0
    %410 = vmatpush1.bf16.msra.mxu0 %v394
    %411 = vmatprep.subr.bf16.mxu0 0
    %412 = vmatpush1.bf16.msra.mxu0 %v395
    %413 = vmatprep.subr.bf16.mxu0 0
    %414 = vmatpush1.bf16.msra.mxu0 %v396
    %415 = vmatprep.subr.bf16.mxu0 0
    %416 = vmatpush1.bf16.msra.mxu0 0
    %417 = vmatprep.subr.bf16.mxu0 0
    %418 = vmatpush1.bf16.msra.mxu0 0
    %419 = vmatprep.subr.bf16.mxu0 0
    %420 = vmatpush1.bf16.msra.mxu0 0
    %421 = vmatprep.subr.bf16.mxu0 0
    %422 = vmatpush1.bf16.msra.mxu0 0
    %423 = vmatprep.subr.bf16.mxu0 0
    %424 = vmatpush1.bf16.msra.mxu0 0
    %425 = vmatprep.subr.bf16.mxu0 0
    %426 = vmatpush1.bf16.msra.mxu0 0
    %427 = vmatprep.subr.bf16.mxu0 0
    %428 = vmatpush1.bf16.msra.mxu0 0
    %429 = vmatprep.subr.bf16.mxu0 0
    %430 = vmatpush1.bf16.msra.mxu0 0
    %431 = vmatprep.subr.bf16.mxu0 0
    %432 = vmatpush1.bf16.msra.mxu0 0
    %433 = vmatprep.subr.bf16.mxu0 0
    %434 = vmatpush1.bf16.msra.mxu0 0
    %435 = vmatprep.subr.bf16.mxu0 0
    %436 = vmatpush1.bf16.msra.mxu0 0
    %437 = vmatprep.subr.bf16.mxu0 0
    %438 = vmatpush1.bf16.msra.mxu0 0
    %439 = vmatprep.mubr.bf16.mxu0 0
    %440 = vmatmul.mubr.bf16.gmra.mrb[0].mxu0 %v402
    %v441 = vpop.f32.mrb[0].mxu0
    %v442 = vadd.f32 %v363, %v441
    %v443 = vpop.f32.mrb[0].mxu0
    %v444 = vpop.f32.mrb[0].mxu0
    %v445 = vadd.f32 %v366, %v444
    %v446 = vpop.f32.mrb[0].mxu0
    %447 = vmatprep.mubr.bf16.mxu0 0
    %448 = vmatmul.mubr.bf16.gmra.mrb[0].mxu0 %v405
    %v449 = vpop.f32.mrb[0].mxu0
    %v450 = vadd.f32 %v371, %v449
    %v451 = vpop.f32.mrb[0].mxu0
    %v452 = vpop.f32.mrb[0].mxu0
    %v453 = vadd.f32 %v374, %v452
    %v454 = vpop.f32.mrb[0].mxu0
    %455 = vdwg.mxu0
    %v456 = vld [vmem:[#allocation2 + $0x2] sm:$0xff]
    %v457 = vld [vmem:[#allocation2 + $0xa] sm:$0xff]
    %v458 = vld [vmem:[#allocation2 + $0x1a] sm:$0xff]
    %v459 = vld [vmem:[#allocation2 + $0x22] sm:$0xff]
    %v460 = vpack.c.bf16 %v457, %v456
    %v461 = vpack.c.bf16 %v459, %v458
    %s462 = scalar_lea.vmem %s4, 64
    %v463 = vld [vmem:[%s462] sm:$0xf]
    %v464 = vld [vmem:[%s462 + $0x4] sm:$0xf]
    %v465 = vld [vmem:[%s462 + $0x8] sm:$0xf]
    %v466 = vld [vmem:[%s462 + $0xc] sm:$0xf]
    %v467 = vld [vmem:[%s462 + $0x10] sm:$0xf]
    %v468 = vld [vmem:[%s462 + $0x14] sm:$0xf]
    %v469 = vld [vmem:[%s462 + $0x18] sm:$0xf]
    %v470 = vld [vmem:[%s462 + $0x1c] sm:$0xf]
    %v479 = vunpack.c.l.b16 %v463
    %v480 = vunpack.c.l.b16 %v464
    %v481 = vunpack.c.l.b16 %v465
    %v482 = vunpack.c.l.b16 %v466
    %v483 = vunpack.c.l.b16 %v467
    %v484 = vunpack.c.l.b16 %v468
    %v485 = vunpack.c.l.b16 %v469
    %v486 = vunpack.c.l.b16 %v470
    %v487 = vpack.c.b16 %v480, %v479
    %v488 = vpack.c.b16 %v482, %v481
    %v489 = vpack.c.b16 %v484, %v483
    %v490 = vpack.c.b16 %v486, %v485
    %v496 = vsel %vm264, %v460, 0
    %v499 = vsel %vm264, %v461, 0
    %501 = vmatprep.subr.bf16.mxu0 0
    %502 = vmatpush1.bf16.msra.mxu0 %v487
    %503 = vmatprep.subr.bf16.mxu0 0
    %504 = vmatpush1.bf16.msra.mxu0 %v488
    %505 = vmatprep.subr.bf16.mxu0 0
    %506 = vmatpush1.bf16.msra.mxu0 %v489
    %507 = vmatprep.subr.bf16.mxu0 0
    %508 = vmatpush1.bf16.msra.mxu0 %v490
    %509 = vmatprep.subr.bf16.mxu0 0
    %510 = vmatpush1.bf16.msra.mxu0 0
    %511 = vmatprep.subr.bf16.mxu0 0
    %512 = vmatpush1.bf16.msra.mxu0 0
    %513 = vmatprep.subr.bf16.mxu0 0
    %514 = vmatpush1.bf16.msra.mxu0 0
    %515 = vmatprep.subr.bf16.mxu0 0
    %516 = vmatpush1.bf16.msra.mxu0 0
    %517 = vmatprep.subr.bf16.mxu0 0
    %518 = vmatpush1.bf16.msra.mxu0 0
    %519 = vmatprep.subr.bf16.mxu0 0
    %520 = vmatpush1.bf16.msra.mxu0 0
    %521 = vmatprep.subr.bf16.mxu0 0
    %522 = vmatpush1.bf16.msra.mxu0 0
    %523 = vmatprep.subr.bf16.mxu0 0
    %524 = vmatpush1.bf16.msra.mxu0 0
    %525 = vmatprep.subr.bf16.mxu0 0
    %526 = vmatpush1.bf16.msra.mxu0 0
    %527 = vmatprep.subr.bf16.mxu0 0
    %528 = vmatpush1.bf16.msra.mxu0 0
    %529 = vmatprep.subr.bf16.mxu0 0
    %530 = vmatpush1.bf16.msra.mxu0 0
    %531 = vmatprep.subr.bf16.mxu0 0
    %532 = vmatpush1.bf16.msra.mxu0 0
    %533 = vmatprep.mubr.bf16.mxu0 0
    %534 = vmatmul.mubr.bf16.gmra.mrb[0].mxu0 %v496
    %v535 = vpop.f32.mrb[0].mxu0
    %v536 = vadd.f32 0.0, %v535
    %v537 = vpop.f32.mrb[0].mxu0
    %v538 = vpop.f32.mrb[0].mxu0
    %v539 = vadd.f32 0.0, %v538
    %v540 = vpop.f32.mrb[0].mxu0
    %541 = vmatprep.mubr.bf16.mxu0 0
    %542 = vmatmul.mubr.bf16.gmra.mrb[0].mxu0 %v499
    %v543 = vpop.f32.mrb[0].mxu0
    %v544 = vadd.f32 0.0, %v543
    %v545 = vpop.f32.mrb[0].mxu0
    %v546 = vpop.f32.mrb[0].mxu0
    %v547 = vadd.f32 0.0, %v546
    %v548 = vpop.f32.mrb[0].mxu0
    %549 = vdwg.mxu0
    %v550 = vadd.f32 %v442, %v536
    %v551 = vadd.f32 %v445, %v539
    %v552 = vadd.f32 %v450, %v544
    %v553 = vadd.f32 %v453, %v547
    %v554 = vld [vmem:[%s5] sm:$0x1]
    %v556 = vlaneseq
    %v557 = vshrl.u32 %v556, 7
    %v558 = vsub.s32 0, %v557
    %v559 = vrot.slane %v554, %v558
    %v561 = vadd.f32 %v550, %v559
    %v562 = vadd.f32 %v551, %v559
    %v563 = vadd.f32 %v552, %v559
    %v564 = vadd.f32 %v553, %v559
    %v565 = vld [vmem:[#allocation4] sm:$0xff]
    %v566 = vld [vmem:[#allocation4 + $0x8] sm:$0xff]
    %v567 = vld [vmem:[#allocation4 + $0x10] sm:$0xff]
    %v568 = vld [vmem:[#allocation4 + $0x18] sm:$0xff]
    %v569 = vld [vmem:[#allocation10] sm:$0xff]
    %v570 = vld [vmem:[#allocation10 + $0x8] sm:$0xff]
    %vm571 = vcmask 130048
    %v573 = vsel %vm571, %v565, 0
    %v576 = vsel %vm571, %v566, 0
    %v579 = vsel %vm571, %v567, 0
    %v582 = vsel %vm571, %v568, 0
    %584 = vmatprep.subr.mxu0 0.0
    %585 = vmatpush1.msra.mxu0 %v569
    %586 = vmatprep.subr.mxu0 0.0
    %587 = vmatpush1.msra.mxu0 %v570
    %588 = vmatprep.subr.mxu0 0.0
    %589 = vmatpush1.msra.mxu0 0.0
    %590 = vmatprep.subr.mxu0 0.0
    %591 = vmatpush1.msra.mxu0 0.0
    %592 = vmatprep.subr.mxu0 0.0
    %593 = vmatpush1.msra.mxu0 0.0
    %594 = vmatprep.subr.mxu0 0.0
    %595 = vmatpush1.msra.mxu0 0.0
    %596 = vmatprep.subr.mxu0 0.0
    %597 = vmatpush1.msra.mxu0 0.0
    %598 = vmatprep.subr.mxu0 0.0
    %599 = vmatpush1.msra.mxu0 0.0
    %600 = vmatprep.subr.mxu0 0.0
    %601 = vmatpush1.msra.mxu0 0.0
    %602 = vmatprep.subr.mxu0 0.0
    %603 = vmatpush1.msra.mxu0 0.0
    %604 = vmatprep.subr.mxu0 0.0
    %605 = vmatpush1.msra.mxu0 0.0
    %606 = vmatprep.subr.mxu0 0.0
    %607 = vmatpush1.msra.mxu0 0.0
    %608 = vmatprep.subr.mxu0 0.0
    %609 = vmatpush1.msra.mxu0 0.0
    %610 = vmatprep.subr.mxu0 0.0
    %611 = vmatpush1.msra.mxu0 0.0
    %612 = vmatprep.subr.mxu0 0.0
    %613 = vmatpush1.msra.mxu0 0.0
    %614 = vmatprep.subr.mxu0 0.0
    %615 = vmatpush1.msra.mxu0 0.0
    %616 = vmatprep.subr.mxu0 0.0
    %617 = vmatpush1.msra.mxu0 0.0
    %618 = vmatprep.subr.mxu0 0.0
    %619 = vmatpush1.msra.mxu0 0.0
    %620 = vmatprep.subr.mxu0 0.0
    %621 = vmatpush1.msra.mxu0 0.0
    %622 = vmatprep.subr.mxu0 0.0
    %623 = vmatpush1.msra.mxu0 0.0
    %624 = vmatprep.subr.mxu0 0.0
    %625 = vmatpush1.msra.mxu0 0.0
    %626 = vmatprep.subr.mxu0 0.0
    %627 = vmatpush1.msra.mxu0 0.0
    %628 = vmatprep.subr.mxu0 0.0
    %629 = vmatpush1.msra.mxu0 0.0
    %630 = vmatprep.subr.mxu0 0.0
    %631 = vmatpush1.msra.mxu0 0.0
    %632 = vmatprep.subr.mxu0 0.0
    %633 = vmatpush1.msra.mxu0 0.0
    %634 = vmatprep.subr.mxu0 0.0
    %635 = vmatpush1.msra.mxu0 0.0
    %636 = vmatprep.subr.mxu0 0.0
    %637 = vmatpush1.msra.mxu0 0.0
    %638 = vmatprep.subr.mxu0 0.0
    %639 = vmatpush1.msra.mxu0 0.0
    %640 = vmatprep.subr.mxu0 0.0
    %641 = vmatpush1.msra.mxu0 0.0
    %642 = vmatprep.subr.mxu0 0.0
    %643 = vmatpush1.msra.mxu0 0.0
    %644 = vmatprep.subr.mxu0 0.0
    %645 = vmatpush1.msra.mxu0 0.0
    %646 = vmatprep.subr.mxu0 0.0
    %647 = vmatpush1.msra.mxu0 0.0
    %648 = vmatprep.mubr.f32.mxu0 0.0
    %649 = vmatmul.mubr.f32.gmra.mrb[0].mxu0 %v573
    %v650 = vpop.f32.mrb[0].mxu0
    %v651 = vadd.f32 0.0, %v650
    %v652 = vpop.f32.mrb[0].mxu0
    %653 = vmatprep.mubr.f32.mxu0 0.0
    %654 = vmatmul.mubr.f32.gmra.mrb[0].mxu0 %v576
    %v655 = vpop.f32.mrb[0].mxu0
    %v656 = vadd.f32 0.0, %v655
    %v657 = vpop.f32.mrb[0].mxu0
    %658 = vmatprep.mubr.f32.mxu0 0.0
    %659 = vmatmul.mubr.f32.gmra.mrb[0].mxu0 %v579
    %v660 = vpop.f32.mrb[0].mxu0
    %v661 = vadd.f32 0.0, %v660
    %v662 = vpop.f32.mrb[0].mxu0
    %663 = vmatprep.mubr.f32.mxu0 0.0
    %664 = vmatmul.mubr.f32.gmra.mrb[0].mxu0 %v582
    %v665 = vpop.f32.mrb[0].mxu0
    %v666 = vadd.f32 0.0, %v665
    %v667 = vpop.f32.mrb[0].mxu0
    %668 = vdwg.mxu0
    %v669 = vadd.f32 %v561, %v651
    %v670 = vadd.f32 %v562, %v656
    %v671 = vadd.f32 %v563, %v661
    %v672 = vadd.f32 %v564, %v666
    %vm673 = vcmp.ge.f32.partialorder %v669, 0.0
    %vm674 = vcmp.ge.f32.partialorder %v670, 0.0
    %vm675 = vcmp.ge.f32.partialorder %v671, 0.0
    %vm676 = vcmp.ge.f32.partialorder %v672, 0.0
    %v677 = vmul.f32 %v669, 0.2
    %v678 = vmul.f32 %v670, 0.2
    %v679 = vmul.f32 %v671, 0.2
    %v680 = vmul.f32 %v672, 0.2
    %v681 = vsel %vm673, %v669, %v677
    %v682 = vsel %vm674, %v670, %v678
    %v683 = vsel %vm675, %v671, %v679
    %v684 = vsel %vm676, %v672, %v680
    %v685 = vadd.f32 %v681, %v682
    %v686 = vrot.slane %v685, 4
    %v687 = vadd.f32 %v685, %v686
    %v688 = vrot.slane %v687, 2
    %v689 = vadd.f32 %v687, %v688
    %v690 = vrot.slane %v689, 1
    %v691 = vadd.f32 %v689, %v690
    %v692 = vadd.f32 %v683, %v684
    %v693 = vrot.slane %v692, 4
    %v694 = vadd.f32 %v692, %v693
    %v695 = vrot.slane %v694, 2
    %v696 = vadd.f32 %v694, %v695
    %v697 = vrot.slane %v696, 1
    %v698 = vadd.f32 %v696, %v697
    %v699 = vmul.f32 %v681, %v681
    %v700 = vmul.f32 %v682, %v682
    %v701 = vmul.f32 %v683, %v683
    %v702 = vmul.f32 %v684, %v684
    %v703 = vadd.f32 %v699, %v700
    %v704 = vrot.slane %v703, 4
    %v705 = vadd.f32 %v703, %v704
    %v706 = vrot.slane %v705, 2
    %v707 = vadd.f32 %v705, %v706
    %v708 = vrot.slane %v707, 1
    %v709 = vadd.f32 %v707, %v708
    %v710 = vadd.f32 %v701, %v702
    %v711 = vrot.slane %v710, 4
    %v712 = vadd.f32 %v710, %v711
    %v713 = vrot.slane %v712, 2
    %v714 = vadd.f32 %v712, %v713
    %v715 = vrot.slane %v714, 1
    %v716 = vadd.f32 %v714, %v715
    %vm719 = vcmask 1041409
    %v720 = vsel %vm719, %v698, %v691
    %vm724 = vcmask 1043459
    %v725 = vsel %vm724, %v716, %v709
    %vm727 = vcmask 1041408
    %v728 = vsel %vm727, %v720, %v725
    %729 = vmatprep.subr.mxu0 0.0
    %730 = vmatpush1.msra.mxu0 %v238
    %731 = vmatprep.subr.mxu0 0.0
    %732 = vmatpush1.msra.mxu0 %v239
    %733 = vmatprep.subr.mxu0 0.0
    %734 = vmatpush1.msra.mxu0 %v240
    %735 = vmatprep.subr.mxu0 0.0
    %736 = vmatpush1.msra.mxu0 %v241
    %737 = vmatprep.subr.mxu0 0.0
    %738 = vmatpush1.msra.mxu0 %v242
    %739 = vmatprep.subr.mxu0 0.0
    %740 = vmatpush1.msra.mxu0 %v243
    %741 = vmatprep.subr.mxu0 0.0
    %742 = vmatpush1.msra.mxu0 %v244
    %743 = vmatprep.subr.mxu0 0.0
    %744 = vmatpush1.msra.mxu0 %v245
    %745 = vmatprep.subr.mxu0 0.0
    %746 = vmatpush1.msra.mxu0 %v246
    %747 = vmatprep.subr.mxu0 0.0
    %748 = vmatpush1.msra.mxu0 %v247
    %749 = vmatprep.subr.mxu0 0.0
    %750 = vmatpush1.msra.mxu0 %v248
    %751 = vmatprep.subr.mxu0 0.0
    %752 = vmatpush1.msra.mxu0 %v249
    %753 = vmatprep.subr.mxu0 0.0
    %754 = vmatpush1.msra.mxu0 %v250
    %755 = vmatprep.subr.mxu0 0.0
    %756 = vmatpush1.msra.mxu0 %v251
    %757 = vmatprep.subr.mxu0 0.0
    %758 = vmatpush1.msra.mxu0 %v252
    %759 = vmatprep.subr.mxu0 0.0
    %760 = vmatpush1.msra.mxu0 %v253
    %761 = vmatprep.subr.mxu0 0.0
    %762 = vmatpush1.msra.mxu0 0.0
    %763 = vmatprep.subr.mxu0 0.0
    %764 = vmatpush1.msra.mxu0 0.0
    %765 = vmatprep.subr.mxu0 0.0
    %766 = vmatpush1.msra.mxu0 0.0
    %767 = vmatprep.subr.mxu0 0.0
    %768 = vmatpush1.msra.mxu0 0.0
    %769 = vmatprep.subr.mxu0 0.0
    %770 = vmatpush1.msra.mxu0 0.0
    %771 = vmatprep.subr.mxu0 0.0
    %772 = vmatpush1.msra.mxu0 0.0
    %773 = vmatprep.subr.mxu0 0.0
    %774 = vmatpush1.msra.mxu0 0.0
    %775 = vmatprep.subr.mxu0 0.0
    %776 = vmatpush1.msra.mxu0 0.0
    %777 = vmatprep.subr.mxu0 0.0
    %778 = vmatpush1.msra.mxu0 0.0
    %779 = vmatprep.subr.mxu0 0.0
    %780 = vmatpush1.msra.mxu0 0.0
    %781 = vmatprep.subr.mxu0 0.0
    %782 = vmatpush1.msra.mxu0 0.0
    %783 = vmatprep.subr.mxu0 0.0
    %784 = vmatpush1.msra.mxu0 0.0
    %785 = vmatprep.subr.mxu0 0.0
    %786 = vmatpush1.msra.mxu0 0.0
    %787 = vmatprep.subr.mxu0 0.0
    %788 = vmatpush1.msra.mxu0 0.0
    %789 = vmatprep.subr.mxu0 0.0
    %790 = vmatpush1.msra.mxu0 0.0
    %791 = vmatprep.subr.mxu0 0.0
    %792 = vmatpush1.msra.mxu0 0.0
    %793 = vmatprep.mubr.f32.mxu0 0.0
    %794 = vmatmul.mubr.f32.gmra.mrb[0].mxu0 %v728
    %v795 = vpop.f32.mrb[0].mxu0
    %v796 = vadd.f32 0.0, %v795
    %v797 = vpop.f32.mrb[0].mxu0
    %798 = vdwg.mxu0
    %v799 = vmul.f32 %v796, 0.00390625
    %v800 = vmul.f32 %v799, %v799
    %v802 = vrot.slane %v800, 6
    %v804 = vsub.f32 %v799, %v802
    %v805 = vmax.f32 %v804, 0.0
    %v806 = vadd.f32 %v805, 1e-05
    %v807 = vrsqrt.pop %v806
    %v809 = vrot.slane %v235, 6
    %v811 = vmul.f32 %v807, %v809
    %v813 = vrot.slane %v811, 2
    %v815 = vmul.f32 %v799, %v813
    %817 = vrot.lane.b32.xlu0 %v815, 8
    %v818 = vpop.permute.xlu0 %817
    %v820 = vsub.f32 %v235, %v818
    %v822 = vrot.slane %v820, 6
    %823 = vrot.lane.b32.xlu0 %v822, 120
    %v824 = vpop.permute.xlu0 %823
    %v826 = vsel %vm727, %v813, %v824
    %vm827 = vcmask 64512
    %v829 = vsel %vm827, %v826, 0
    %831 = vmatprep.subr.mxu0 0.0
    %832 = vmatpush1.msra.mxu0 %v254
    %833 = vmatprep.subr.mxu0 0.0
    %834 = vmatpush1.msra.mxu0 0.0
    %835 = vmatprep.subr.mxu0 0.0
    %836 = vmatpush1.msra.mxu0 0.0
    %837 = vmatprep.subr.mxu0 0.0
    %838 = vmatpush1.msra.mxu0 0.0
    %839 = vmatprep.subr.mxu0 0.0
    %840 = vmatpush1.msra.mxu0 0.0
    %841 = vmatprep.subr.mxu0 0.0
    %842 = vmatpush1.msra.mxu0 0.0
    %843 = vmatprep.subr.mxu0 0.0
    %844 = vmatpush1.msra.mxu0 0.0
    %845 = vmatprep.subr.mxu0 0.0
    %846 = vmatpush1.msra.mxu0 0.0
    %847 = vmatprep.subr.mxu0 0.0
    %848 = vmatpush1.msra.mxu0 0.0
    %849 = vmatprep.subr.mxu0 0.0
    %850 = vmatpush1.msra.mxu0 0.0
    %851 = vmatprep.subr.mxu0 0.0
    %852 = vmatpush1.msra.mxu0 0.0
    %853 = vmatprep.subr.mxu0 0.0
    %854 = vmatpush1.msra.mxu0 0.0
    %855 = vmatprep.subr.mxu0 0.0
    %856 = vmatpush1.msra.mxu0 0.0
    %857 = vmatprep.subr.mxu0 0.0
    %858 = vmatpush1.msra.mxu0 0.0
    %859 = vmatprep.subr.mxu0 0.0
    %860 = vmatpush1.msra.mxu0 0.0
    %861 = vmatprep.subr.mxu0 0.0
    %862 = vmatpush1.msra.mxu0 0.0
    %863 = vmatprep.subr.mxu0 0.0
    %864 = vmatpush1.msra.mxu0 0.0
    %865 = vmatprep.subr.mxu0 0.0
    %866 = vmatpush1.msra.mxu0 0.0
    %867 = vmatprep.subr.mxu0 0.0
    %868 = vmatpush1.msra.mxu0 0.0
    %869 = vmatprep.subr.mxu0 0.0
    %870 = vmatpush1.msra.mxu0 0.0
    %871 = vmatprep.subr.mxu0 0.0
    %872 = vmatpush1.msra.mxu0 0.0
    %873 = vmatprep.subr.mxu0 0.0
    %874 = vmatpush1.msra.mxu0 0.0
    %875 = vmatprep.subr.mxu0 0.0
    %876 = vmatpush1.msra.mxu0 0.0
    %877 = vmatprep.subr.mxu0 0.0
    %878 = vmatpush1.msra.mxu0 0.0
    %879 = vmatprep.subr.mxu0 0.0
    %880 = vmatpush1.msra.mxu0 0.0
    %881 = vmatprep.subr.mxu0 0.0
    %882 = vmatpush1.msra.mxu0 0.0
    %883 = vmatprep.subr.mxu0 0.0
    %884 = vmatpush1.msra.mxu0 0.0
    %885 = vmatprep.subr.mxu0 0.0
    %886 = vmatpush1.msra.mxu0 0.0
    %887 = vmatprep.subr.mxu0 0.0
    %888 = vmatpush1.msra.mxu0 0.0
    %889 = vmatprep.subr.mxu0 0.0
    %890 = vmatpush1.msra.mxu0 0.0
    %891 = vmatprep.subr.mxu0 0.0
    %892 = vmatpush1.msra.mxu0 0.0
    %893 = vmatprep.subr.mxu0 0.0
    %894 = vmatpush1.msra.mxu0 0.0
    %895 = vmatprep.mubr.f32.mxu0 0.0
    %896 = vmatmul.mubr.f32.gmra.mrb[0].mxu0 %v829
    %v897 = vpop.f32.mrb[0].mxu0
    %v898 = vadd.f32 0.0, %v897
    %v899 = vpop.f32.mrb[0].mxu0
    %900 = vdwg.mxu0
    %v903 = vunpack.c.l.s4 1966171168
    %v904 = vunpack.c.0.s8 %v903
    %v905 = vlaneseq
    %v906 = vshrl.u32 %v905, 7
    %v907 = vsub.s32 %v904, %v906
    %v908 = vrot.slane %v898, %v907
    %v909 = vcombine.high %v908, %v908
    %v911 = vunpack.c.l.s4 1966171168
    %v912 = vunpack.c.0.s8 %v911
    %v913 = vlaneseq
    %v914 = vshrl.u32 %v913, 7
    %v915 = vsub.s32 %v912, %v914
    %v916 = vrot.slane %v908, %v915
    %v918 = vunpack.c.l.s4 1966171168
    %v919 = vunpack.c.0.s8 %v918
    %v920 = vlaneseq
    %v921 = vshrl.u32 %v920, 7
    %v922 = vsub.s32 %v919, %v921
    %v923 = vrot.slane %v909, %v922
    %v924 = vcombine.high %v916, %v916
    %v925 = vcombine.high %v923, %v923
    %v926 = vlaneseq
    %v927 = vshrl.u32 %v926, 7
    %v928 = vsub.s32 0, %v927
    %v929 = vrot.slane %v916, %v928
    %v930 = vlaneseq
    %v931 = vshrl.u32 %v930, 7
    %v932 = vsub.s32 0, %v931
    %v933 = vrot.slane %v923, %v932
    %v936 = vmul.f32 %v681, %v929
    %v937 = vmul.f32 %v682, %v929
    %v938 = vmul.f32 %v683, %v933
    %v939 = vmul.f32 %v684, %v933
    %v940 = vlaneseq
    %v941 = vshrl.u32 %v940, 7
    %v942 = vsub.s32 0, %v941
    %v943 = vrot.slane %v924, %v942
    %v944 = vlaneseq
    %v945 = vshrl.u32 %v944, 7
    %v946 = vsub.s32 0, %v945
    %v947 = vrot.slane %v925, %v946
    %v950 = vadd.f32 %v936, %v943
    %v951 = vadd.f32 %v937, %v943
    %v952 = vadd.f32 %v938, %v947
    %v953 = vadd.f32 %v939, %v947
    %954 = vst [vmem:[#allocation3] sm:$0x1] 0.0
    %955 = vst [vmem:[#allocation3 + $0x18] sm:$0x1] 0.0
    %956 = vst [vmem:[#allocation3 + $0x11] sm:$0x1] 0.0
    %957 = vst [vmem:[#allocation3 + $0x29] sm:$0x1] 0.0
    %958 = vst [vmem:[#allocation3 + $0x1] sm:$0xff] %v950
    %959 = vst [vmem:[#allocation3 + $0x9] sm:$0xff] %v951
    %960 = vst [vmem:[#allocation3 + $0x19] sm:$0xff] %v952
    %961 = vst [vmem:[#allocation3 + $0x21] sm:$0xff] %v953
    %v962 = vld [vmem:[#allocation3] sm:$0xff]
    %v963 = vld [vmem:[#allocation3 + $0x8] sm:$0xff]
    %v964 = vld [vmem:[#allocation3 + $0x18] sm:$0xff]
    %v965 = vld [vmem:[#allocation3 + $0x20] sm:$0xff]
    %v966 = vpack.c.bf16 %v963, %v962
    %v967 = vpack.c.bf16 %v965, %v964
    %v968 = vld [vmem:[#allocation12] sm:$0xf]
    %v969 = vld [vmem:[#allocation12 + $0x4] sm:$0xf]
    %v970 = vld [vmem:[#allocation12 + $0x8] sm:$0xf]
    %v971 = vld [vmem:[#allocation12 + $0xc] sm:$0xf]
    %v972 = vld [vmem:[#allocation12 + $0x10] sm:$0xf]
    %v973 = vld [vmem:[#allocation12 + $0x14] sm:$0xf]
    %v974 = vld [vmem:[#allocation12 + $0x18] sm:$0xf]
    %v975 = vld [vmem:[#allocation12 + $0x1c] sm:$0xf]
    %v976 = vld [vmem:[#allocation12 + $0x20] sm:$0xf]
    %v977 = vld [vmem:[#allocation12 + $0x24] sm:$0xf]
    %v978 = vld [vmem:[#allocation12 + $0x28] sm:$0xf]
    %v979 = vld [vmem:[#allocation12 + $0x2c] sm:$0xf]
    %v980 = vld [vmem:[#allocation12 + $0x30] sm:$0xf]
    %v981 = vld [vmem:[#allocation12 + $0x34] sm:$0xf]
    %v982 = vld [vmem:[#allocation12 + $0x38] sm:$0xf]
    %v983 = vld [vmem:[#allocation12 + $0x3c] sm:$0xf]
    %v984 = vld [vmem:[#allocation3 + $0x1] sm:$0xff]
    %v985 = vld [vmem:[#allocation3 + $0x9] sm:$0xff]
    %v986 = vld [vmem:[#allocation3 + $0x19] sm:$0xff]
    %v987 = vld [vmem:[#allocation3 + $0x21] sm:$0xff]
    %v988 = vpack.c.bf16 %v985, %v984
    %v989 = vpack.c.bf16 %v987, %v986
    %s990 = scalar_lea.vmem [#allocation12], 64
    %v991 = vld [vmem:[%s990] sm:$0xf]
    %v992 = vld [vmem:[%s990 + $0x4] sm:$0xf]
    %v993 = vld [vmem:[%s990 + $0x8] sm:$0xf]
    %v994 = vld [vmem:[%s990 + $0xc] sm:$0xf]
    %v995 = vld [vmem:[%s990 + $0x10] sm:$0xf]
    %v996 = vld [vmem:[%s990 + $0x14] sm:$0xf]
    %v997 = vld [vmem:[%s990 + $0x18] sm:$0xf]
    %v998 = vld [vmem:[%s990 + $0x1c] sm:$0xf]
    %v999 = vld [vmem:[%s990 + $0x20] sm:$0xf]
    %v1000 = vld [vmem:[%s990 + $0x24] sm:$0xf]
    %v1001 = vld [vmem:[%s990 + $0x28] sm:$0xf]
    %v1002 = vld [vmem:[%s990 + $0x2c] sm:$0xf]
    %v1003 = vld [vmem:[%s990 + $0x30] sm:$0xf]
    %v1004 = vld [vmem:[%s990 + $0x34] sm:$0xf]
    %v1005 = vld [vmem:[%s990 + $0x38] sm:$0xf]
    %v1006 = vld [vmem:[%s990 + $0x3c] sm:$0xf]
    %v1023 = vunpack.c.l.b16 %v991
    %v1024 = vunpack.c.l.b16 %v992
    %v1025 = vunpack.c.l.b16 %v993
    %v1026 = vunpack.c.l.b16 %v994
    %v1027 = vunpack.c.l.b16 %v995
    %v1028 = vunpack.c.l.b16 %v996
    %v1029 = vunpack.c.l.b16 %v997
    %v1030 = vunpack.c.l.b16 %v998
    %v1031 = vunpack.c.l.b16 %v999
    %v1032 = vunpack.c.l.b16 %v1000
    %v1033 = vunpack.c.l.b16 %v1001
    %v1034 = vunpack.c.l.b16 %v1002
    %v1035 = vunpack.c.l.b16 %v1003
    %v1036 = vunpack.c.l.b16 %v1004
    %v1037 = vunpack.c.l.b16 %v1005
    %v1038 = vunpack.c.l.b16 %v1006
    %v1039 = vpack.c.b16 %v1024, %v1023
    %v1040 = vpack.c.b16 %v1026, %v1025
    %v1041 = vpack.c.b16 %v1028, %v1027
    %v1042 = vpack.c.b16 %v1030, %v1029
    %v1043 = vpack.c.b16 %v1032, %v1031
    %v1044 = vpack.c.b16 %v1034, %v1033
    %v1045 = vpack.c.b16 %v1036, %v1035
    %v1046 = vpack.c.b16 %v1038, %v1037
    %1055 = vmatprep.subr.bf16.mxu0 0
    %1056 = vmatpush1.bf16.msra.mxu0 %v1039
    %1057 = vmatprep.subr.bf16.mxu0 0
    %1058 = vmatpush1.bf16.msra.mxu0 %v1040
    %1059 = vmatprep.subr.bf16.mxu0 0
    %1060 = vmatpush1.bf16.msra.mxu0 %v1041
    %1061 = vmatprep.subr.bf16.mxu0 0
    %1062 = vmatpush1.bf16.msra.mxu0 %v1042
    %1063 = vmatprep.subr.bf16.mxu0 0
    %1064 = vmatpush1.bf16.msra.mxu0 %v1043
    %1065 = vmatprep.subr.bf16.mxu0 0
    %1066 = vmatpush1.bf16.msra.mxu0 %v1044
    %1067 = vmatprep.subr.bf16.mxu0 0
    %1068 = vmatpush1.bf16.msra.mxu0 %v1045
    %1069 = vmatprep.subr.bf16.mxu0 0
    %1070 = vmatpush1.bf16.msra.mxu0 %v1046
    %1071 = vmatprep.subr.bf16.mxu0 0
    %1072 = vmatpush1.bf16.msra.mxu0 0
    %1073 = vmatprep.subr.bf16.mxu0 0
    %1074 = vmatpush1.bf16.msra.mxu0 0
    %1075 = vmatprep.subr.bf16.mxu0 0
    %1076 = vmatpush1.bf16.msra.mxu0 0
    %1077 = vmatprep.subr.bf16.mxu0 0
    %1078 = vmatpush1.bf16.msra.mxu0 0
    %1079 = vmatprep.subr.bf16.mxu0 0
    %1080 = vmatpush1.bf16.msra.mxu0 0
    %1081 = vmatprep.subr.bf16.mxu0 0
    %1082 = vmatpush1.bf16.msra.mxu0 0
    %1083 = vmatprep.subr.bf16.mxu0 0
    %1084 = vmatpush1.bf16.msra.mxu0 0
    %1085 = vmatprep.subr.bf16.mxu0 0
    %1086 = vmatpush1.bf16.msra.mxu0 0
    %1087 = vmatprep.mubr.bf16.mxu0 0
    %1088 = vmatmul.mubr.bf16.gmra.mrb[0].mxu0 %v988
    %v1089 = vpop.f32.mrb[0].mxu0
    %v1090 = vadd.f32 0.0, %v1089
    %v1091 = vpop.f32.mrb[0].mxu0
    %v1092 = vpop.f32.mrb[0].mxu0
    %v1093 = vadd.f32 0.0, %v1092
    %v1094 = vpop.f32.mrb[0].mxu0
    %1095 = vmatprep.mubr.bf16.mxu0 0
    %1096 = vmatmul.mubr.bf16.gmra.mrb[0].mxu0 %v989
    %v1097 = vpop.f32.mrb[0].mxu0
    %v1098 = vadd.f32 0.0, %v1097
    %v1099 = vpop.f32.mrb[0].mxu0
    %v1100 = vpop.f32.mrb[0].mxu0
    %v1101 = vadd.f32 0.0, %v1100
    %v1102 = vpop.f32.mrb[0].mxu0
    %1103 = vdwg.mxu0
    %v1120 = vunpack.c.l.b16 %v968
    %v1121 = vunpack.c.l.b16 %v969
    %v1122 = vunpack.c.l.b16 %v970
    %v1123 = vunpack.c.l.b16 %v971
    %v1124 = vunpack.c.l.b16 %v972
    %v1125 = vunpack.c.l.b16 %v973
    %v1126 = vunpack.c.l.b16 %v974
    %v1127 = vunpack.c.l.b16 %v975
    %v1128 = vunpack.c.l.b16 %v976
    %v1129 = vunpack.c.l.b16 %v977
    %v1130 = vunpack.c.l.b16 %v978
    %v1131 = vunpack.c.l.b16 %v979
    %v1132 = vunpack.c.l.b16 %v980
    %v1133 = vunpack.c.l.b16 %v981
    %v1134 = vunpack.c.l.b16 %v982
    %v1135 = vunpack.c.l.b16 %v983
    %v1136 = vpack.c.b16 %v1121, %v1120
    %v1137 = vpack.c.b16 %v1123, %v1122
    %v1138 = vpack.c.b16 %v1125, %v1124
    %v1139 = vpack.c.b16 %v1127, %v1126
    %v1140 = vpack.c.b16 %v1129, %v1128
    %v1141 = vpack.c.b16 %v1131, %v1130
    %v1142 = vpack.c.b16 %v1133, %v1132
    %v1143 = vpack.c.b16 %v1135, %v1134
    %1152 = vmatprep.subr.bf16.mxu0 0
    %1153 = vmatpush1.bf16.msra.mxu0 %v1136
    %1154 = vmatprep.subr.bf16.mxu0 0
    %1155 = vmatpush1.bf16.msra.mxu0 %v1137
    %1156 = vmatprep.subr.bf16.mxu0 0
    %1157 = vmatpush1.bf16.msra.mxu0 %v1138
    %1158 = vmatprep.subr.bf16.mxu0 0
    %1159 = vmatpush1.bf16.msra.mxu0 %v1139
    %1160 = vmatprep.subr.bf16.mxu0 0
    %1161 = vmatpush1.bf16.msra.mxu0 %v1140
    %1162 = vmatprep.subr.bf16.mxu0 0
    %1163 = vmatpush1.bf16.msra.mxu0 %v1141
    %1164 = vmatprep.subr.bf16.mxu0 0
    %1165 = vmatpush1.bf16.msra.mxu0 %v1142
    %1166 = vmatprep.subr.bf16.mxu0 0
    %1167 = vmatpush1.bf16.msra.mxu0 %v1143
    %1168 = vmatprep.subr.bf16.mxu0 0
    %1169 = vmatpush1.bf16.msra.mxu0 0
    %1170 = vmatprep.subr.bf16.mxu0 0
    %1171 = vmatpush1.bf16.msra.mxu0 0
    %1172 = vmatprep.subr.bf16.mxu0 0
    %1173 = vmatpush1.bf16.msra.mxu0 0
    %1174 = vmatprep.subr.bf16.mxu0 0
    %1175 = vmatpush1.bf16.msra.mxu0 0
    %1176 = vmatprep.subr.bf16.mxu0 0
    %1177 = vmatpush1.bf16.msra.mxu0 0
    %1178 = vmatprep.subr.bf16.mxu0 0
    %1179 = vmatpush1.bf16.msra.mxu0 0
    %1180 = vmatprep.subr.bf16.mxu0 0
    %1181 = vmatpush1.bf16.msra.mxu0 0
    %1182 = vmatprep.subr.bf16.mxu0 0
    %1183 = vmatpush1.bf16.msra.mxu0 0
    %1184 = vmatprep.mubr.bf16.mxu0 0
    %1185 = vmatmul.mubr.bf16.gmra.mrb[0].mxu0 %v966
    %v1186 = vpop.f32.mrb[0].mxu0
    %v1187 = vadd.f32 %v1090, %v1186
    %v1188 = vpop.f32.mrb[0].mxu0
    %v1189 = vpop.f32.mrb[0].mxu0
    %v1190 = vadd.f32 %v1093, %v1189
    %v1191 = vpop.f32.mrb[0].mxu0
    %1192 = vmatprep.mubr.bf16.mxu0 0
    %1193 = vmatmul.mubr.bf16.gmra.mrb[0].mxu0 %v967
    %v1194 = vpop.f32.mrb[0].mxu0
    %v1195 = vadd.f32 %v1098, %v1194
    %v1196 = vpop.f32.mrb[0].mxu0
    %v1197 = vpop.f32.mrb[0].mxu0
    %v1198 = vadd.f32 %v1101, %v1197
    %v1199 = vpop.f32.mrb[0].mxu0
    %1200 = vdwg.mxu0
    %v1201 = vld [vmem:[#allocation3 + $0x2] sm:$0xff]
    %v1202 = vld [vmem:[#allocation3 + $0xa] sm:$0xff]
    %v1203 = vld [vmem:[#allocation3 + $0x1a] sm:$0xff]
    %v1204 = vld [vmem:[#allocation3 + $0x22] sm:$0xff]
    %v1205 = vpack.c.bf16 %v1202, %v1201
    %v1206 = vpack.c.bf16 %v1204, %v1203
    %s1207 = scalar_lea.vmem [#allocation12], 128
    %v1208 = vld [vmem:[%s1207] sm:$0xf]
    %v1209 = vld [vmem:[%s1207 + $0x4] sm:$0xf]
    %v1210 = vld [vmem:[%s1207 + $0x8] sm:$0xf]
    %v1211 = vld [vmem:[%s1207 + $0xc] sm:$0xf]
    %v1212 = vld [vmem:[%s1207 + $0x10] sm:$0xf]
    %v1213 = vld [vmem:[%s1207 + $0x14] sm:$0xf]
    %v1214 = vld [vmem:[%s1207 + $0x18] sm:$0xf]
    %v1215 = vld [vmem:[%s1207 + $0x1c] sm:$0xf]
    %v1216 = vld [vmem:[%s1207 + $0x20] sm:$0xf]
    %v1217 = vld [vmem:[%s1207 + $0x24] sm:$0xf]
    %v1218 = vld [vmem:[%s1207 + $0x28] sm:$0xf]
    %v1219 = vld [vmem:[%s1207 + $0x2c] sm:$0xf]
    %v1220 = vld [vmem:[%s1207 + $0x30] sm:$0xf]
    %v1221 = vld [vmem:[%s1207 + $0x34] sm:$0xf]
    %v1222 = vld [vmem:[%s1207 + $0x38] sm:$0xf]
    %v1223 = vld [vmem:[%s1207 + $0x3c] sm:$0xf]
    %v1240 = vunpack.c.l.b16 %v1208
    %v1241 = vunpack.c.l.b16 %v1209
    %v1242 = vunpack.c.l.b16 %v1210
    %v1243 = vunpack.c.l.b16 %v1211
    %v1244 = vunpack.c.l.b16 %v1212
    %v1245 = vunpack.c.l.b16 %v1213
    %v1246 = vunpack.c.l.b16 %v1214
    %v1247 = vunpack.c.l.b16 %v1215
    %v1248 = vunpack.c.l.b16 %v1216
    %v1249 = vunpack.c.l.b16 %v1217
    %v1250 = vunpack.c.l.b16 %v1218
    %v1251 = vunpack.c.l.b16 %v1219
    %v1252 = vunpack.c.l.b16 %v1220
    %v1253 = vunpack.c.l.b16 %v1221
    %v1254 = vunpack.c.l.b16 %v1222
    %v1255 = vunpack.c.l.b16 %v1223
    %v1256 = vpack.c.b16 %v1241, %v1240
    %v1257 = vpack.c.b16 %v1243, %v1242
    %v1258 = vpack.c.b16 %v1245, %v1244
    %v1259 = vpack.c.b16 %v1247, %v1246
    %v1260 = vpack.c.b16 %v1249, %v1248
    %v1261 = vpack.c.b16 %v1251, %v1250
    %v1262 = vpack.c.b16 %v1253, %v1252
    %v1263 = vpack.c.b16 %v1255, %v1254
    %1272 = vmatprep.subr.bf16.mxu0 0
    %1273 = vmatpush1.bf16.msra.mxu0 %v1256
    %1274 = vmatprep.subr.bf16.mxu0 0
    %1275 = vmatpush1.bf16.msra.mxu0 %v1257
    %1276 = vmatprep.subr.bf16.mxu0 0
    %1277 = vmatpush1.bf16.msra.mxu0 %v1258
    %1278 = vmatprep.subr.bf16.mxu0 0
    %1279 = vmatpush1.bf16.msra.mxu0 %v1259
    %1280 = vmatprep.subr.bf16.mxu0 0
    %1281 = vmatpush1.bf16.msra.mxu0 %v1260
    %1282 = vmatprep.subr.bf16.mxu0 0
    %1283 = vmatpush1.bf16.msra.mxu0 %v1261
    %1284 = vmatprep.subr.bf16.mxu0 0
    %1285 = vmatpush1.bf16.msra.mxu0 %v1262
    %1286 = vmatprep.subr.bf16.mxu0 0
    %1287 = vmatpush1.bf16.msra.mxu0 %v1263
    %1288 = vmatprep.subr.bf16.mxu0 0
    %1289 = vmatpush1.bf16.msra.mxu0 0
    %1290 = vmatprep.subr.bf16.mxu0 0
    %1291 = vmatpush1.bf16.msra.mxu0 0
    %1292 = vmatprep.subr.bf16.mxu0 0
    %1293 = vmatpush1.bf16.msra.mxu0 0
    %1294 = vmatprep.subr.bf16.mxu0 0
    %1295 = vmatpush1.bf16.msra.mxu0 0
    %1296 = vmatprep.subr.bf16.mxu0 0
    %1297 = vmatpush1.bf16.msra.mxu0 0
    %1298 = vmatprep.subr.bf16.mxu0 0
    %1299 = vmatpush1.bf16.msra.mxu0 0
    %1300 = vmatprep.subr.bf16.mxu0 0
    %1301 = vmatpush1.bf16.msra.mxu0 0
    %1302 = vmatprep.subr.bf16.mxu0 0
    %1303 = vmatpush1.bf16.msra.mxu0 0
    %1304 = vmatprep.mubr.bf16.mxu0 0
    %1305 = vmatmul.mubr.bf16.gmra.mrb[0].mxu0 %v1205
    %v1306 = vpop.f32.mrb[0].mxu0
    %v1307 = vadd.f32 0.0, %v1306
    %v1308 = vpop.f32.mrb[0].mxu0
    %v1309 = vpop.f32.mrb[0].mxu0
    %v1310 = vadd.f32 0.0, %v1309
    %v1311 = vpop.f32.mrb[0].mxu0
    %1312 = vmatprep.mubr.bf16.mxu0 0
    %1313 = vmatmul.mubr.bf16.gmra.mrb[0].mxu0 %v1206
    %v1314 = vpop.f32.mrb[0].mxu0
    %v1315 = vadd.f32 0.0, %v1314
    %v1316 = vpop.f32.mrb[0].mxu0
    %v1317 = vpop.f32.mrb[0].mxu0
    %v1318 = vadd.f32 0.0, %v1317
    %v1319 = vpop.f32.mrb[0].mxu0
    %1320 = vdwg.mxu0
    %v1321 = vadd.f32 %v1187, %v1307
    %v1322 = vadd.f32 %v1190, %v1310
    %v1323 = vadd.f32 %v1195, %v1315
    %v1324 = vadd.f32 %v1198, %v1318
    %v1325 = vld [vmem:[#allocation13] sm:$0x1]
    %v1327 = vlaneseq
    %v1328 = vshrl.u32 %v1327, 7
    %v1329 = vsub.s32 0, %v1328
    %v1330 = vrot.slane %v1325, %v1329
    %v1332 = vadd.f32 %v1321, %v1330
    %v1333 = vadd.f32 %v1322, %v1330
    %v1334 = vadd.f32 %v1323, %v1330
    %v1335 = vadd.f32 %v1324, %v1330
    %v1336 = vld [vmem:[#allocation7] sm:$0xff]
    %v1337 = vld [vmem:[#allocation7 + $0x8] sm:$0xff]
    %v1338 = vld [vmem:[#allocation7 + $0x10] sm:$0xff]
    %v1339 = vld [vmem:[#allocation7 + $0x18] sm:$0xff]
    %v1340 = vld [vmem:[#allocation15] sm:$0xff]
    %v1341 = vld [vmem:[#allocation15 + $0x8] sm:$0xff]
    %v1343 = vsel %vm571, %v1336, 0
    %v1346 = vsel %vm571, %v1337, 0
    %v1349 = vsel %vm571, %v1338, 0
    %v1352 = vsel %vm571, %v1339, 0
    %1354 = vmatprep.subr.mxu0 0.0
    %1355 = vmatpush1.msra.mxu0 %v1340
    %1356 = vmatprep.subr.mxu0 0.0
    %1357 = vmatpush1.msra.mxu0 %v1341
    %1358 = vmatprep.subr.mxu0 0.0
    %1359 = vmatpush1.msra.mxu0 0.0
    %1360 = vmatprep.subr.mxu0 0.0
    %1361 = vmatpush1.msra.mxu0 0.0
    %1362 = vmatprep.subr.mxu0 0.0
    %1363 = vmatpush1.msra.mxu0 0.0
    %1364 = vmatprep.subr.mxu0 0.0
    %1365 = vmatpush1.msra.mxu0 0.0
    %1366 = vmatprep.subr.mxu0 0.0
    %1367 = vmatpush1.msra.mxu0 0.0
    %1368 = vmatprep.subr.mxu0 0.0
    %1369 = vmatpush1.msra.mxu0 0.0
    %1370 = vmatprep.subr.mxu0 0.0
    %1371 = vmatpush1.msra.mxu0 0.0
    %1372 = vmatprep.subr.mxu0 0.0
    %1373 = vmatpush1.msra.mxu0 0.0
    %1374 = vmatprep.subr.mxu0 0.0
    %1375 = vmatpush1.msra.mxu0 0.0
    %1376 = vmatprep.subr.mxu0 0.0
    %1377 = vmatpush1.msra.mxu0 0.0
    %1378 = vmatprep.subr.mxu0 0.0
    %1379 = vmatpush1.msra.mxu0 0.0
    %1380 = vmatprep.subr.mxu0 0.0
    %1381 = vmatpush1.msra.mxu0 0.0
    %1382 = vmatprep.subr.mxu0 0.0
    %1383 = vmatpush1.msra.mxu0 0.0
    %1384 = vmatprep.subr.mxu0 0.0
    %1385 = vmatpush1.msra.mxu0 0.0
    %1386 = vmatprep.subr.mxu0 0.0
    %1387 = vmatpush1.msra.mxu0 0.0
    %1388 = vmatprep.subr.mxu0 0.0
    %1389 = vmatpush1.msra.mxu0 0.0
    %1390 = vmatprep.subr.mxu0 0.0
    %1391 = vmatpush1.msra.mxu0 0.0
    %1392 = vmatprep.subr.mxu0 0.0
    %1393 = vmatpush1.msra.mxu0 0.0
    %1394 = vmatprep.subr.mxu0 0.0
    %1395 = vmatpush1.msra.mxu0 0.0
    %1396 = vmatprep.subr.mxu0 0.0
    %1397 = vmatpush1.msra.mxu0 0.0
    %1398 = vmatprep.subr.mxu0 0.0
    %1399 = vmatpush1.msra.mxu0 0.0
    %1400 = vmatprep.subr.mxu0 0.0
    %1401 = vmatpush1.msra.mxu0 0.0
    %1402 = vmatprep.subr.mxu0 0.0
    %1403 = vmatpush1.msra.mxu0 0.0
    %1404 = vmatprep.subr.mxu0 0.0
    %1405 = vmatpush1.msra.mxu0 0.0
    %1406 = vmatprep.subr.mxu0 0.0
    %1407 = vmatpush1.msra.mxu0 0.0
    %1408 = vmatprep.subr.mxu0 0.0
    %1409 = vmatpush1.msra.mxu0 0.0
    %1410 = vmatprep.subr.mxu0 0.0
    %1411 = vmatpush1.msra.mxu0 0.0
    %1412 = vmatprep.subr.mxu0 0.0
    %1413 = vmatpush1.msra.mxu0 0.0
    %1414 = vmatprep.subr.mxu0 0.0
    %1415 = vmatpush1.msra.mxu0 0.0
    %1416 = vmatprep.subr.mxu0 0.0
    %1417 = vmatpush1.msra.mxu0 0.0
    %1418 = vmatprep.mubr.f32.mxu0 0.0
    %1419 = vmatmul.mubr.f32.gmra.mrb[0].mxu0 %v1343
    %v1420 = vpop.f32.mrb[0].mxu0
    %v1421 = vadd.f32 0.0, %v1420
    %v1422 = vpop.f32.mrb[0].mxu0
    %1423 = vmatprep.mubr.f32.mxu0 0.0
    %1424 = vmatmul.mubr.f32.gmra.mrb[0].mxu0 %v1346
    %v1425 = vpop.f32.mrb[0].mxu0
    %v1426 = vadd.f32 0.0, %v1425
    %v1427 = vpop.f32.mrb[0].mxu0
    %1428 = vmatprep.mubr.f32.mxu0 0.0
    %1429 = vmatmul.mubr.f32.gmra.mrb[0].mxu0 %v1349
    %v1430 = vpop.f32.mrb[0].mxu0
    %v1431 = vadd.f32 0.0, %v1430
    %v1432 = vpop.f32.mrb[0].mxu0
    %1433 = vmatprep.mubr.f32.mxu0 0.0
    %1434 = vmatmul.mubr.f32.gmra.mrb[0].mxu0 %v1352
    %v1435 = vpop.f32.mrb[0].mxu0
    %v1436 = vadd.f32 0.0, %v1435
    %v1437 = vpop.f32.mrb[0].mxu0
    %1438 = vdwg.mxu0
    %v1439 = vadd.f32 %v1332, %v1421
    %v1440 = vadd.f32 %v1333, %v1426
    %v1441 = vadd.f32 %v1334, %v1431
    %v1442 = vadd.f32 %v1335, %v1436
    %vm1443 = vcmp.ge.f32.partialorder %v1439, 0.0
    %vm1444 = vcmp.ge.f32.partialorder %v1440, 0.0
    %vm1445 = vcmp.ge.f32.partialorder %v1441, 0.0
    %vm1446 = vcmp.ge.f32.partialorder %v1442, 0.0
    %v1447 = vmul.f32 %v1439, 0.2
    %v1448 = vmul.f32 %v1440, 0.2
    %v1449 = vmul.f32 %v1441, 0.2
    %v1450 = vmul.f32 %v1442, 0.2
    %v1451 = vsel %vm1443, %v1439, %v1447
    %v1452 = vsel %vm1444, %v1440, %v1448
    %v1453 = vsel %vm1445, %v1441, %v1449
    %v1454 = vsel %vm1446, %v1442, %v1450
    %v1455 = vadd.f32 %v1451, %v1452
    %v1456 = vrot.slane %v1455, 4
    %v1457 = vadd.f32 %v1455, %v1456
    %v1458 = vrot.slane %v1457, 2
    %v1459 = vadd.f32 %v1457, %v1458
    %v1460 = vrot.slane %v1459, 1
    %v1461 = vadd.f32 %v1459, %v1460
    %v1462 = vadd.f32 %v1453, %v1454
    %v1463 = vrot.slane %v1462, 4
    %v1464 = vadd.f32 %v1462, %v1463
    %v1465 = vrot.slane %v1464, 2
    %v1466 = vadd.f32 %v1464, %v1465
    %v1467 = vrot.slane %v1466, 1
    %v1468 = vadd.f32 %v1466, %v1467
    %v1469 = vmul.f32 %v1451, %v1451
    %v1470 = vmul.f32 %v1452, %v1452
    %v1471 = vmul.f32 %v1453, %v1453
    %v1472 = vmul.f32 %v1454, %v1454
    %v1473 = vadd.f32 %v1469, %v1470
    %v1474 = vrot.slane %v1473, 4
    %v1475 = vadd.f32 %v1473, %v1474
    %v1476 = vrot.slane %v1475, 2
    %v1477 = vadd.f32 %v1475, %v1476
    %v1478 = vrot.slane %v1477, 1
    %v1479 = vadd.f32 %v1477, %v1478
    %v1480 = vadd.f32 %v1471, %v1472
    %v1481 = vrot.slane %v1480, 4
    %v1482 = vadd.f32 %v1480, %v1481
    %v1483 = vrot.slane %v1482, 2
    %v1484 = vadd.f32 %v1482, %v1483
    %v1485 = vrot.slane %v1484, 1
    %v1486 = vadd.f32 %v1484, %v1485
    %v1489 = vsel %vm719, %v1468, %v1461
    %v1493 = vsel %vm724, %v1486, %v1479
    %v1495 = vsel %vm727, %v1489, %v1493
    %1496 = vmatprep.subr.mxu0 0.0
    %1497 = vmatpush1.msra.mxu0 %v238
    %1498 = vmatprep.subr.mxu0 0.0
    %1499 = vmatpush1.msra.mxu0 %v239
    %1500 = vmatprep.subr.mxu0 0.0
    %1501 = vmatpush1.msra.mxu0 %v240
    %1502 = vmatprep.subr.mxu0 0.0
    %1503 = vmatpush1.msra.mxu0 %v241
    %1504 = vmatprep.subr.mxu0 0.0
    %1505 = vmatpush1.msra.mxu0 %v242
    %1506 = vmatprep.subr.mxu0 0.0
    %1507 = vmatpush1.msra.mxu0 %v243
    %1508 = vmatprep.subr.mxu0 0.0
    %1509 = vmatpush1.msra.mxu0 %v244
    %1510 = vmatprep.subr.mxu0 0.0
    %1511 = vmatpush1.msra.mxu0 %v245
    %1512 = vmatprep.subr.mxu0 0.0
    %1513 = vmatpush1.msra.mxu0 %v246
    %1514 = vmatprep.subr.mxu0 0.0
    %1515 = vmatpush1.msra.mxu0 %v247
    %1516 = vmatprep.subr.mxu0 0.0
    %1517 = vmatpush1.msra.mxu0 %v248
    %1518 = vmatprep.subr.mxu0 0.0
    %1519 = vmatpush1.msra.mxu0 %v249
    %1520 = vmatprep.subr.mxu0 0.0
    %1521 = vmatpush1.msra.mxu0 %v250
    %1522 = vmatprep.subr.mxu0 0.0
    %1523 = vmatpush1.msra.mxu0 %v251
    %1524 = vmatprep.subr.mxu0 0.0
    %1525 = vmatpush1.msra.mxu0 %v252
    %1526 = vmatprep.subr.mxu0 0.0
    %1527 = vmatpush1.msra.mxu0 %v253
    %1528 = vmatprep.subr.mxu0 0.0
    %1529 = vmatpush1.msra.mxu0 0.0
    %1530 = vmatprep.subr.mxu0 0.0
    %1531 = vmatpush1.msra.mxu0 0.0
    %1532 = vmatprep.subr.mxu0 0.0
    %1533 = vmatpush1.msra.mxu0 0.0
    %1534 = vmatprep.subr.mxu0 0.0
    %1535 = vmatpush1.msra.mxu0 0.0
    %1536 = vmatprep.subr.mxu0 0.0
    %1537 = vmatpush1.msra.mxu0 0.0
    %1538 = vmatprep.subr.mxu0 0.0
    %1539 = vmatpush1.msra.mxu0 0.0
    %1540 = vmatprep.subr.mxu0 0.0
    %1541 = vmatpush1.msra.mxu0 0.0
    %1542 = vmatprep.subr.mxu0 0.0
    %1543 = vmatpush1.msra.mxu0 0.0
    %1544 = vmatprep.subr.mxu0 0.0
    %1545 = vmatpush1.msra.mxu0 0.0
    %1546 = vmatprep.subr.mxu0 0.0
    %1547 = vmatpush1.msra.mxu0 0.0
    %1548 = vmatprep.subr.mxu0 0.0
    %1549 = vmatpush1.msra.mxu0 0.0
    %1550 = vmatprep.subr.mxu0 0.0
    %1551 = vmatpush1.msra.mxu0 0.0
    %1552 = vmatprep.subr.mxu0 0.0
    %1553 = vmatpush1.msra.mxu0 0.0
    %1554 = vmatprep.subr.mxu0 0.0
    %1555 = vmatpush1.msra.mxu0 0.0
    %1556 = vmatprep.subr.mxu0 0.0
    %1557 = vmatpush1.msra.mxu0 0.0
    %1558 = vmatprep.subr.mxu0 0.0
    %1559 = vmatpush1.msra.mxu0 0.0
    %1560 = vmatprep.mubr.f32.mxu0 0.0
    %1561 = vmatmul.mubr.f32.gmra.mrb[0].mxu0 %v1495
    %v1562 = vpop.f32.mrb[0].mxu0
    %v1563 = vadd.f32 0.0, %v1562
    %v1564 = vpop.f32.mrb[0].mxu0
    %1565 = vdwg.mxu0
    %v1566 = vmul.f32 %v1563, 0.00390625
    %v1567 = vmul.f32 %v1566, %v1566
    %v1569 = vrot.slane %v1567, 6
    %v1571 = vsub.f32 %v1566, %v1569
    %v1572 = vmax.f32 %v1571, 0.0
    %v1573 = vadd.f32 %v1572, 1e-05
    %v1574 = vrsqrt.pop %v1573
    %1575 = vrot.lane.b32.xlu0 %v809, 112
    %v1576 = vpop.permute.xlu0 %1575
    %v1578 = vmul.f32 %v1574, %v1576
    %v1580 = vrot.slane %v1578, 2
    %v1582 = vmul.f32 %v1566, %v1580
    %1584 = vrot.lane.b32.xlu0 %v1582, 24
    %v1585 = vpop.permute.xlu0 %1584
    %v1587 = vsub.f32 %v235, %v1585
    %v1589 = vrot.slane %v1587, 6
    %1590 = vrot.lane.b32.xlu0 %v1589, 104
    %v1591 = vpop.permute.xlu0 %1590
    %v1593 = vsel %vm727, %v1580, %v1591
    %v1595 = vsel %vm827, %v1593, 0
    %1597 = vmatprep.subr.mxu0 0.0
    %1598 = vmatpush1.msra.mxu0 %v254
    %1599 = vmatprep.subr.mxu0 0.0
    %1600 = vmatpush1.msra.mxu0 0.0
    %1601 = vmatprep.subr.mxu0 0.0
    %1602 = vmatpush1.msra.mxu0 0.0
    %1603 = vmatprep.subr.mxu0 0.0
    %1604 = vmatpush1.msra.mxu0 0.0
    %1605 = vmatprep.subr.mxu0 0.0
    %1606 = vmatpush1.msra.mxu0 0.0
    %1607 = vmatprep.subr.mxu0 0.0
    %1608 = vmatpush1.msra.mxu0 0.0
    %1609 = vmatprep.subr.mxu0 0.0
    %1610 = vmatpush1.msra.mxu0 0.0
    %1611 = vmatprep.subr.mxu0 0.0
    %1612 = vmatpush1.msra.mxu0 0.0
    %1613 = vmatprep.subr.mxu0 0.0
    %1614 = vmatpush1.msra.mxu0 0.0
    %1615 = vmatprep.subr.mxu0 0.0
    %1616 = vmatpush1.msra.mxu0 0.0
    %1617 = vmatprep.subr.mxu0 0.0
    %1618 = vmatpush1.msra.mxu0 0.0
    %1619 = vmatprep.subr.mxu0 0.0
    %1620 = vmatpush1.msra.mxu0 0.0
    %1621 = vmatprep.subr.mxu0 0.0
    %1622 = vmatpush1.msra.mxu0 0.0
    %1623 = vmatprep.subr.mxu0 0.0
    %1624 = vmatpush1.msra.mxu0 0.0
    %1625 = vmatprep.subr.mxu0 0.0
    %1626 = vmatpush1.msra.mxu0 0.0
    %1627 = vmatprep.subr.mxu0 0.0
    %1628 = vmatpush1.msra.mxu0 0.0
    %1629 = vmatprep.subr.mxu0 0.0
    %1630 = vmatpush1.msra.mxu0 0.0
    %1631 = vmatprep.subr.mxu0 0.0
    %1632 = vmatpush1.msra.mxu0 0.0
    %1633 = vmatprep.subr.mxu0 0.0
    %1634 = vmatpush1.msra.mxu0 0.0
    %1635 = vmatprep.subr.mxu0 0.0
    %1636 = vmatpush1.msra.mxu0 0.0
    %1637 = vmatprep.subr.mxu0 0.0
    %1638 = vmatpush1.msra.mxu0 0.0
    %1639 = vmatprep.subr.mxu0 0.0
    %1640 = vmatpush1.msra.mxu0 0.0
    %1641 = vmatprep.subr.mxu0 0.0
    %1642 = vmatpush1.msra.mxu0 0.0
    %1643 = vmatprep.subr.mxu0 0.0
    %1644 = vmatpush1.msra.mxu0 0.0
    %1645 = vmatprep.subr.mxu0 0.0
    %1646 = vmatpush1.msra.mxu0 0.0
    %1647 = vmatprep.subr.mxu0 0.0
    %1648 = vmatpush1.msra.mxu0 0.0
    %1649 = vmatprep.subr.mxu0 0.0
    %1650 = vmatpush1.msra.mxu0 0.0
    %1651 = vmatprep.subr.mxu0 0.0
    %1652 = vmatpush1.msra.mxu0 0.0
    %1653 = vmatprep.subr.mxu0 0.0
    %1654 = vmatpush1.msra.mxu0 0.0
    %1655 = vmatprep.subr.mxu0 0.0
    %1656 = vmatpush1.msra.mxu0 0.0
    %1657 = vmatprep.subr.mxu0 0.0
    %1658 = vmatpush1.msra.mxu0 0.0
    %1659 = vmatprep.subr.mxu0 0.0
    %1660 = vmatpush1.msra.mxu0 0.0
    %1661 = vmatprep.mubr.f32.mxu0 0.0
    %1662 = vmatmul.mubr.f32.gmra.mrb[0].mxu0 %v1595
    %v1663 = vpop.f32.mrb[0].mxu0
    %v1664 = vadd.f32 0.0, %v1663
    %v1665 = vpop.f32.mrb[0].mxu0
    %1666 = vdwg.mxu0
    %v1669 = vunpack.c.l.s4 1966171168
    %v1670 = vunpack.c.0.s8 %v1669
    %v1671 = vlaneseq
    %v1672 = vshrl.u32 %v1671, 7
    %v1673 = vsub.s32 %v1670, %v1672
    %v1674 = vrot.slane %v1664, %v1673
    %v1675 = vcombine.high %v1674, %v1674
    %v1677 = vunpack.c.l.s4 1966171168
    %v1678 = vunpack.c.0.s8 %v1677
    %v1679 = vlaneseq
    %v1680 = vshrl.u32 %v1679, 7
    %v1681 = vsub.s32 %v1678, %v1680
    %v1682 = vrot.slane %v1674, %v1681
    %v1684 = vunpack.c.l.s4 1966171168
    %v1685 = vunpack.c.0.s8 %v1684
    %v1686 = vlaneseq
    %v1687 = vshrl.u32 %v1686, 7
    %v1688 = vsub.s32 %v1685, %v1687
    %v1689 = vrot.slane %v1675, %v1688
    %v1690 = vcombine.high %v1682, %v1682
    %v1691 = vcombine.high %v1689, %v1689
    %v1692 = vlaneseq
    %v1693 = vshrl.u32 %v1692, 7
    %v1694 = vsub.s32 0, %v1693
    %v1695 = vrot.slane %v1682, %v1694
    %v1696 = vlaneseq
    %v1697 = vshrl.u32 %v1696, 7
    %v1698 = vsub.s32 0, %v1697
    %v1699 = vrot.slane %v1689, %v1698
    %v1702 = vmul.f32 %v1451, %v1695
    %v1703 = vmul.f32 %v1452, %v1695
    %v1704 = vmul.f32 %v1453, %v1699
    %v1705 = vmul.f32 %v1454, %v1699
    %v1706 = vlaneseq
    %v1707 = vshrl.u32 %v1706, 7
    %v1708 = vsub.s32 0, %v1707
    %v1709 = vrot.slane %v1690, %v1708
    %v1710 = vlaneseq
    %v1711 = vshrl.u32 %v1710, 7
    %v1712 = vsub.s32 0, %v1711
    %v1713 = vrot.slane %v1691, %v1712
    %v1716 = vadd.f32 %v1702, %v1709
    %v1717 = vadd.f32 %v1703, %v1709
    %v1718 = vadd.f32 %v1704, %v1713
    %v1719 = vadd.f32 %v1705, %v1713
    %1720 = vst [vmem:[#allocation18] sm:$0xff] %v1716
    %1721 = vst [vmem:[#allocation18 + $0x8] sm:$0xff] %v1717
    %1722 = vst [vmem:[#allocation18 + $0x10] sm:$0xff] %v1718
    %1723 = vst [vmem:[#allocation18 + $0x18] sm:$0xff] %v1719
    // Predicated region
    $region90: #{tpu_custom_call.1} parent=1 // pred_check
      _
    $region91: #{tpu_custom_call.1} parent=1 // pred_check_branch
      %1725 = sbr.rel (0) target = $region93
    $region92: #{tpu_custom_call.1} parent=1 // pred_region
      %s1727 = ssub.s32 512, 512
      %1728 = vsyncadd [#allocation6], %s1727
      %s1729 = sshll.u32 [#allocation18], 4
      %s1730 = int_to_ptr.vmem [resolvable:$true] %s1729
      %1735 = dma.vmem_to_hbm [thread:$0]  %s1730, 512, %s14, [#allocation6], 128, 128, 8
    $region93: #{tpu_custom_call.1} parent=1 // pred_fallthru
      _
    // Predicated region
    $region94: #{tpu_custom_call.1} parent=1 // pred_check
      _
    $region95: #{tpu_custom_call.1} parent=1 // pred_check_branch
      %1737 = sbr.rel (0) target = $region97
    $region96: #{tpu_custom_call.1} parent=1 // pred_region
      %1738 = dma.done [#allocation6], 512
    $region97: #{tpu_custom_call.1} parent=1 // pred_fallthru
      _
    %1739 = vsyncpa [#allocation5], 1
    %1740 = vsyncpa [#allocation8], 1
    %1741 = vsyncpa [#allocation11], 1
    %1742 = vsyncpa [#allocation14], 1
    %1743 = vsyncpa [#allocation17], 1
    %1744 = vsyncpa [#allocation6], 1

</llo_original>
